<compile_context>
chip_gen: v7x
topology: tpu7x:2x2x1
jax: 0.10.0
libtpu: 0.0.40
codegen_flags: <defaults>
</compile_context>

<pallas_src>
import math
import jax
import jax.numpy as jnp
from jax.experimental import pallas as pl
from jax.experimental.pallas import tpu as pltpu
import numpy as np

# ---- model hyperparameters (small, consistent with the module's kwargs) ----
BATCH = 2          # batch_size
SEQ = 8            # sequence length
INPUT_SIZE = 16    # kwargs['input_size']   (multiple of 8 -> slab rows stay aligned)
HIDDEN = 32        # kwargs['hidden_size']
NUM_LAYERS = 2     # kwargs['num_layers']
NUM_CLASSES = 4    # num_classes
HALF = HIDDEN // 2
G4 = 4 * HIDDEN    # 128 lanes -> every slab row is one full vreg row

# ---- packed-weight slab layout (all section starts are multiples of 8 rows) ----
ROWS_PER_REC_LAYER = HIDDEN + HIDDEN + 8          # w_ih, w_hh, bias (1 row padded to 8)
OFF_WIH0 = 0
OFF_WHH0 = OFF_WIH0 + INPUT_SIZE
OFF_B0   = OFF_WHH0 + HIDDEN
OFF_REC  = OFF_B0 + 8
OFF_W1   = OFF_REC + (NUM_LAYERS - 1) * ROWS_PER_REC_LAYER
OFF_B1   = OFF_W1 + HIDDEN
OFF_W2   = OFF_B1 + 8
OFF_B2   = OFF_W2 + HALF
TOTAL_ROWS = OFF_B2 + 8


def lstm_head_kernel(x_ref,        # (T*B, I)  time-major rows: t*B + b
                     slab_ref,     # (TOTAL_ROWS, 4H)  packed weights/biases
                     out_ref):     # (B, C)
    B = out_ref.shape[0]
    T = x_ref.shape[0] // B
    H = HIDDEN

    def cell(pre_t, h, c, w_hh):
        # Recurrent critical path: one MXU matmul + one add + two EUP pushes + VALU FMAs.
        gates = pre_t + jnp.dot(h, w_hh, preferred_element_type=jnp.float32)   # (B, 4H)
        sig = jnp.tanh(gates * 0.5) * 0.5 + 0.5     # sigmoid via single EUP tanh (no divide)
        i_g = sig[:, 0 * H:1 * H]
        f_g = sig[:, 1 * H:2 * H]
        o_g = sig[:, 3 * H:4 * H]
        g_g = jnp.tanh(gates[:, 2 * H:3 * H])       # quarter-width EUP push
        c_new = f_g * c + i_g * g_g
        h_new = o_g * jnp.tanh(c_new)
        return h_new, c_new

    zeros = jnp.zeros((B, H), jnp.float32)

    # ----- layer 0: hoisted input projection (one matmul for all T steps) -----
    w_ih0 = slab_ref[OFF_WIH0:OFF_WIH0 + INPUT_SIZE, :]
    w_hh0 = slab_ref[OFF_WHH0:OFF_WHH0 + H, :]
    b0 = slab_ref[OFF_B0:OFF_B0 + 1, :]
    pre0 = (jnp.dot(x_ref[...], w_ih0, preferred_element_type=jnp.float32)
            + b0)                                   # (T*B, 4H), time-major

    h, c = zeros, zeros
    layer_seq = []                                  # layer-0 hidden sequence as SSA values
    for t in range(T):                              # fully unrolled (T is static)
        h, c = cell(pre0[t * B:(t + 1) * B, :], h, c, w_hh0)   # contiguous sublane slice
        layer_seq.append(h)

    # ----- layers 1 .. L-1 -----
    for l in range(1, NUM_LAYERS):                  # static layer loop
        base = OFF_REC + (l - 1) * ROWS_PER_REC_LAYER
        w_ih_l = slab_ref[base:base + H, :]                     # loaded once per layer
        w_hh_l = slab_ref[base + H:base + 2 * H, :]             # loaded once per layer
        b_l = jnp.broadcast_to(slab_ref[base + 2 * H:base + 2 * H + 1, :], (B, G4))
        is_last = (l == NUM_LAYERS - 1)
        h, c = zeros, zeros
        next_seq = []
        for t in range(T):                          # fully unrolled
            # Input projection depends only on the previous layer's output at t, so it
            # sits off this layer's h-recurrence critical path (wavefront scheduling).
            pre_t = (jnp.dot(layer_seq[t], w_ih_l,
                             preferred_element_type=jnp.float32) + b_l)
            h, c = cell(pre_t, h, c, w_hh_l)
            if not is_last:                         # last layer: only h_T is consumed
                next_seq.append(h)
        layer_seq = next_seq

    # ----- head: relu(linear1(h_T)) -> linear2 (runs once, off the recurrence) -----
    w1 = slab_ref[OFF_W1:OFF_W1 + H, :][:, :HALF]
    b1 = slab_ref[OFF_B1:OFF_B1 + 1, :][:, :HALF]
    w2 = slab_ref[OFF_W2:OFF_W2 + HALF, :][:, :NUM_CLASSES]
    b2 = slab_ref[OFF_B2:OFF_B2 + 1, :][:, :NUM_CLASSES]
    y = jnp.maximum(jnp.dot(h, w1, preferred_element_type=jnp.float32) + b1, 0.0)
    out_ref[...] = jnp.dot(y, w2, preferred_element_type=jnp.float32) + b2


@jax.jit
def lstm_forward(x_btd, slab):
    """x_btd: (B, T, I) batch_first, like the PyTorch module. slab: packed weights."""
    B, T, I = x_btd.shape
    # Time-major flatten (row = t*B + b): makes per-step slices contiguous in the kernel.
    x_tb = jnp.transpose(x_btd, (1, 0, 2)).reshape(T * B, I)
    vmem = pl.BlockSpec(memory_space=pltpu.MemorySpace.VMEM)
    return pl.pallas_call(
        lstm_head_kernel,
        out_shape=jax.ShapeDtypeStruct((B, NUM_CLASSES), jnp.float32),
        in_specs=[vmem, vmem],
        out_specs=vmem,
    )(x_tb, slab)


# ---------------- deterministic parameter init (PyTorch-style uniform) ----------------
def init_params(key):
    k_lstm = 1.0 / math.sqrt(HIDDEN)
    keys = jax.random.split(key, 4 * NUM_LAYERS + 4)
    ki = iter(range(len(keys)))

    def u(k, shape, bound):
        return jax.random.uniform(keys[k], shape, jnp.float32, -bound, bound)

    w_ih_list, w_hh_list, b_list = [], [], []
    for l in range(NUM_LAYERS):
        in_dim = INPUT_SIZE if l == 0 else HIDDEN
        w_ih = u(next(ki), (4 * HIDDEN, in_dim), k_lstm)   # PyTorch (4H, in)
        w_hh = u(next(ki), (4 * HIDDEN, HIDDEN), k_lstm)   # PyTorch (4H, H)
        b_ih = u(next(ki), (4 * HIDDEN,), k_lstm)
        b_hh = u(next(ki), (4 * HIDDEN,), k_lstm)
        w_ih_list.append(w_ih.T)                           # -> (in, 4H)
        w_hh_list.append(w_hh.T)                           # -> (H, 4H)
        b_list.append((b_ih + b_hh)[None, :])              # -> (1, 4H)

    k1 = 1.0 / math.sqrt(HIDDEN)
    w1 = u(next(ki), (HALF, HIDDEN), k1)                   # PyTorch (out, in)
    b1 = u(next(ki), (HALF,), k1)
    k2 = 1.0 / math.sqrt(HALF)
    w2 = u(next(ki), (NUM_CLASSES, HALF), k2)
    b2 = u(next(ki), (NUM_CLASSES,), k2)

    return {
        "w_ih0": w_ih_list[0],
        "w_hh0": w_hh_list[0],
        "b0": b_list[0],
        "w_ih_r": jnp.stack(w_ih_list[1:], axis=0),        # (L-1, H, 4H)
        "w_hh_r": jnp.stack(w_hh_list[1:], axis=0),        # (L-1, H, 4H)
        "b_r": jnp.stack(b_list[1:], axis=0),              # (L-1, 1, 4H)
        "w1": w1.T, "b1": b1[None, :],                     # (H, H//2), (1, H//2)
        "w2": w2.T, "b2": b2[None, :],                     # (H//2, C), (1, C)
    }


def pack_params(params):
    """Pack all weights/biases into one (TOTAL_ROWS, 4H) f32 slab (done once, off-line)."""
    slab = jnp.zeros((TOTAL_ROWS, G4), jnp.float32)
    slab = slab.at[OFF_WIH0:OFF_WIH0 + INPUT_SIZE, :].set(params["w_ih0"])
    slab = slab.at[OFF_WHH0:OFF_WHH0 + HIDDEN, :].set(params["w_hh0"])
    slab = slab.at[OFF_B0:OFF_B0 + 1, :].set(params["b0"])
    for l in range(1, NUM_LAYERS):
        base = OFF_REC + (l - 1) * ROWS_PER_REC_LAYER
        slab = slab.at[base:base + HIDDEN, :].set(params["w_ih_r"][l - 1])
        slab = slab.at[base + HIDDEN:base + 2 * HIDDEN, :].set(params["w_hh_r"][l - 1])
        slab = slab.at[base + 2 * HIDDEN:base + 2 * HIDDEN + 1, :].set(params["b_r"][l - 1])
    slab = slab.at[OFF_W1:OFF_W1 + HIDDEN, :HALF].set(params["w1"])
    slab = slab.at[OFF_B1:OFF_B1 + 1, :HALF].set(params["b1"])
    slab = slab.at[OFF_W2:OFF_W2 + HALF, :NUM_CLASSES].set(params["w2"])
    slab = slab.at[OFF_B2:OFF_B2 + 1, :NUM_CLASSES].set(params["b2"])
    return slab


# ---------------- pure-JAX reference for correctness check ----------------
def reference(x_btd, params):
    B, T, _ = x_btd.shape
    inp = x_btd
    for l in range(NUM_LAYERS):
        if l == 0:
            w_ih, w_hh, b = params["w_ih0"], params["w_hh0"], params["b0"]
        else:
            w_ih, w_hh, b = params["w_ih_r"][l - 1], params["w_hh_r"][l - 1], params["b_r"][l - 1]
        h = jnp.zeros((B, HIDDEN), jnp.float32)
        c = jnp.zeros((B, HIDDEN), jnp.float32)
        outs = []
        for t in range(T):
            gates = inp[:, t, :] @ w_ih + h @ w_hh + b
            i_g = jax.nn.sigmoid(gates[:, 0 * HIDDEN:1 * HIDDEN])
            f_g = jax.nn.sigmoid(gates[:, 1 * HIDDEN:2 * HIDDEN])
            g_g = jnp.tanh(gates[:, 2 * HIDDEN:3 * HIDDEN])
            o_g = jax.nn.sigmoid(gates[:, 3 * HIDDEN:4 * HIDDEN])
            c = f_g * c + i_g * g_g
            h = o_g * jnp.tanh(c)
            outs.append(h)
        inp = jnp.stack(outs, axis=1)
    y = jnp.maximum(inp[:, -1, :] @ params["w1"] + params["b1"], 0.0)
    return y @ params["w2"] + params["b2"]


if __name__ == "__main__":
    key = jax.random.PRNGKey(0)
    k_param, k_x = jax.random.split(key)
    params = init_params(k_param)
    slab = pack_params(params)
    x = jax.random.normal(k_x, (BATCH, SEQ, INPUT_SIZE), jnp.float32)  # batch_first

    out = lstm_forward(x, slab)
    out = jax.block_until_ready(out)

    ref = reference(x, params)
    assert out.shape == (BATCH, NUM_CLASSES), out.shape
    np.testing.assert_allclose(np.asarray(out), np.asarray(ref), rtol=1e-4, atol=1e-4)
    print("KERNEL_OK")
</pallas_src>

<mosaic_0001>
module attributes {stable_mosaic.version = 11 : i64} {
  func.func @lstm_head_kernel(%arg0: memref<16x16xf32, #tpu.memory_space<vmem>>, %arg1: memref<192x128xf32, #tpu.memory_space<vmem>>, %arg2: memref<2x4xf32, #tpu.memory_space<vmem>>) attributes {dimension_semantics = [], scalar_prefetch = 0 : i64, scratch_operands = 0 : i64, tpu.core_type = #tpu.core_type<tc>} {
    %cst = arith.constant 0.000000e+00 : f32
    %0 = vector.broadcast %cst : f32 to vector<2x32xf32>
    %c0 = arith.constant 0 : index
    %c0_0 = arith.constant 0 : index
    %1 = vector.load %arg1[%c0, %c0_0] : memref<192x128xf32, #tpu.memory_space<vmem>>, vector<16x128xf32>
    %c16 = arith.constant 16 : index
    %c0_1 = arith.constant 0 : index
    %2 = vector.load %arg1[%c16, %c0_1] : memref<192x128xf32, #tpu.memory_space<vmem>>, vector<32x128xf32>
    %c48 = arith.constant 48 : index
    %c0_2 = arith.constant 0 : index
    %3 = vector.load %arg1[%c48, %c0_2] : memref<192x128xf32, #tpu.memory_space<vmem>>, vector<1x128xf32>
    %c0_3 = arith.constant 0 : index
    %c0_4 = arith.constant 0 : index
    %4 = vector.load %arg0[%c0_3, %c0_4] : memref<16x16xf32, #tpu.memory_space<vmem>>, vector<16x16xf32>
    %cst_5 = arith.constant dense<0.000000e+00> : vector<16x128xf32>
    %5 = tpu.matmul %4, %1, %cst_5 {dimension_numbers = #tpu.dot_dimension_numbers<[1], [0], [0], [1], [0, 0, 1, 1], [], []>} : vector<16x16xf32>, vector<16x128xf32>, vector<16x128xf32> -> vector<16x128xf32>
    %6 = vector.broadcast %3 : vector<1x128xf32> to vector<16x128xf32>
    %7 = arith.addf %5, %6 : vector<16x128xf32>
    %8 = vector.extract_strided_slice %7 {offsets = [0, 0], sizes = [2, 128], strides = [1, 1]} : vector<16x128xf32> to vector<2x128xf32>
    %cst_6 = arith.constant dense<0.000000e+00> : vector<2x128xf32>
    %9 = tpu.matmul %0, %2, %cst_6 {dimension_numbers = #tpu.dot_dimension_numbers<[1], [0], [0], [1], [0, 0, 1, 1], [], []>} : vector<2x32xf32>, vector<32x128xf32>, vector<2x128xf32> -> vector<2x128xf32>
    %10 = arith.addf %8, %9 : vector<2x128xf32>
    %cst_7 = arith.constant 5.000000e-01 : f32
    %11 = vector.broadcast %cst_7 : f32 to vector<2x128xf32>
    %12 = arith.mulf %10, %11 : vector<2x128xf32>
    %13 = math.tanh %12 : vector<2x128xf32>
    %cst_8 = arith.constant 5.000000e-01 : f32
    %14 = vector.broadcast %cst_8 : f32 to vector<2x128xf32>
    %15 = arith.mulf %13, %14 : vector<2x128xf32>
    %cst_9 = arith.constant 5.000000e-01 : f32
    %16 = vector.broadcast %cst_9 : f32 to vector<2x128xf32>
    %17 = arith.addf %15, %16 : vector<2x128xf32>
    %18 = vector.extract_strided_slice %17 {offsets = [0, 0], sizes = [2, 32], strides = [1, 1]} : vector<2x128xf32> to vector<2x32xf32>
    %19 = vector.extract_strided_slice %17 {offsets = [0, 32], sizes = [2, 32], strides = [1, 1]} : vector<2x128xf32> to vector<2x32xf32>
    %20 = vector.extract_strided_slice %17 {offsets = [0, 96], sizes = [2, 32], strides = [1, 1]} : vector<2x128xf32> to vector<2x32xf32>
    %21 = vector.extract_strided_slice %10 {offsets = [0, 64], sizes = [2, 32], strides = [1, 1]} : vector<2x128xf32> to vector<2x32xf32>
    %22 = math.tanh %21 : vector<2x32xf32>
    %23 = arith.mulf %19, %0 : vector<2x32xf32>
    %24 = arith.mulf %18, %22 : vector<2x32xf32>
    %25 = arith.addf %23, %24 : vector<2x32xf32>
    %26 = math.tanh %25 : vector<2x32xf32>
    %27 = arith.mulf %20, %26 : vector<2x32xf32>
    %28 = vector.extract_strided_slice %7 {offsets = [2, 0], sizes = [2, 128], strides = [1, 1]} : vector<16x128xf32> to vector<2x128xf32>
    %cst_10 = arith.constant dense<0.000000e+00> : vector<2x128xf32>
    %29 = tpu.matmul %27, %2, %cst_10 {dimension_numbers = #tpu.dot_dimension_numbers<[1], [0], [0], [1], [0, 0, 1, 1], [], []>} : vector<2x32xf32>, vector<32x128xf32>, vector<2x128xf32> -> vector<2x128xf32>
    %30 = arith.addf %28, %29 : vector<2x128xf32>
    %cst_11 = arith.constant 5.000000e-01 : f32
    %31 = vector.broadcast %cst_11 : f32 to vector<2x128xf32>
    %32 = arith.mulf %30, %31 : vector<2x128xf32>
    %33 = math.tanh %32 : vector<2x128xf32>
    %cst_12 = arith.constant 5.000000e-01 : f32
    %34 = vector.broadcast %cst_12 : f32 to vector<2x128xf32>
    %35 = arith.mulf %33, %34 : vector<2x128xf32>
    %cst_13 = arith.constant 5.000000e-01 : f32
    %36 = vector.broadcast %cst_13 : f32 to vector<2x128xf32>
    %37 = arith.addf %35, %36 : vector<2x128xf32>
    %38 = vector.extract_strided_slice %37 {offsets = [0, 0], sizes = [2, 32], strides = [1, 1]} : vector<2x128xf32> to vector<2x32xf32>
    %39 = vector.extract_strided_slice %37 {offsets = [0, 32], sizes = [2, 32], strides = [1, 1]} : vector<2x128xf32> to vector<2x32xf32>
    %40 = vector.extract_strided_slice %37 {offsets = [0, 96], sizes = [2, 32], strides = [1, 1]} : vector<2x128xf32> to vector<2x32xf32>
    %41 = vector.extract_strided_slice %30 {offsets = [0, 64], sizes = [2, 32], strides = [1, 1]} : vector<2x128xf32> to vector<2x32xf32>
    %42 = math.tanh %41 : vector<2x32xf32>
    %43 = arith.mulf %39, %25 : vector<2x32xf32>
    %44 = arith.mulf %38, %42 : vector<2x32xf32>
    %45 = arith.addf %43, %44 : vector<2x32xf32>
    %46 = math.tanh %45 : vector<2x32xf32>
    %47 = arith.mulf %40, %46 : vector<2x32xf32>
    %48 = vector.extract_strided_slice %7 {offsets = [4, 0], sizes = [2, 128], strides = [1, 1]} : vector<16x128xf32> to vector<2x128xf32>
    %cst_14 = arith.constant dense<0.000000e+00> : vector<2x128xf32>
    %49 = tpu.matmul %47, %2, %cst_14 {dimension_numbers = #tpu.dot_dimension_numbers<[1], [0], [0], [1], [0, 0, 1, 1], [], []>} : vector<2x32xf32>, vector<32x128xf32>, vector<2x128xf32> -> vector<2x128xf32>
    %50 = arith.addf %48, %49 : vector<2x128xf32>
    %cst_15 = arith.constant 5.000000e-01 : f32
    %51 = vector.broadcast %cst_15 : f32 to vector<2x128xf32>
    %52 = arith.mulf %50, %51 : vector<2x128xf32>
    %53 = math.tanh %52 : vector<2x128xf32>
    %cst_16 = arith.constant 5.000000e-01 : f32
    %54 = vector.broadcast %cst_16 : f32 to vector<2x128xf32>
    %55 = arith.mulf %53, %54 : vector<2x128xf32>
    %cst_17 = arith.constant 5.000000e-01 : f32
    %56 = vector.broadcast %cst_17 : f32 to vector<2x128xf32>
    %57 = arith.addf %55, %56 : vector<2x128xf32>
    %58 = vector.extract_strided_slice %57 {offsets = [0, 0], sizes = [2, 32], strides = [1, 1]} : vector<2x128xf32> to vector<2x32xf32>
    %59 = vector.extract_strided_slice %57 {offsets = [0, 32], sizes = [2, 32], strides = [1, 1]} : vector<2x128xf32> to vector<2x32xf32>
    %60 = vector.extract_strided_slice %57 {offsets = [0, 96], sizes = [2, 32], strides = [1, 1]} : vector<2x128xf32> to vector<2x32xf32>
    %61 = vector.extract_strided_slice %50 {offsets = [0, 64], sizes = [2, 32], strides = [1, 1]} : vector<2x128xf32> to vector<2x32xf32>
    %62 = math.tanh %61 : vector<2x32xf32>
    %63 = arith.mulf %59, %45 : vector<2x32xf32>
    %64 = arith.mulf %58, %62 : vector<2x32xf32>
    %65 = arith.addf %63, %64 : vector<2x32xf32>
    %66 = math.tanh %65 : vector<2x32xf32>
    %67 = arith.mulf %60, %66 : vector<2x32xf32>
    %68 = vector.extract_strided_slice %7 {offsets = [6, 0], sizes = [2, 128], strides = [1, 1]} : vector<16x128xf32> to vector<2x128xf32>
    %cst_18 = arith.constant dense<0.000000e+00> : vector<2x128xf32>
    %69 = tpu.matmul %67, %2, %cst_18 {dimension_numbers = #tpu.dot_dimension_numbers<[1], [0], [0], [1], [0, 0, 1, 1], [], []>} : vector<2x32xf32>, vector<32x128xf32>, vector<2x128xf32> -> vector<2x128xf32>
    %70 = arith.addf %68, %69 : vector<2x128xf32>
    %cst_19 = arith.constant 5.000000e-01 : f32
    %71 = vector.broadcast %cst_19 : f32 to vector<2x128xf32>
    %72 = arith.mulf %70, %71 : vector<2x128xf32>
    %73 = math.tanh %72 : vector<2x128xf32>
    %cst_20 = arith.constant 5.000000e-01 : f32
    %74 = vector.broadcast %cst_20 : f32 to vector<2x128xf32>
    %75 = arith.mulf %73, %74 : vector<2x128xf32>
    %cst_21 = arith.constant 5.000000e-01 : f32
    %76 = vector.broadcast %cst_21 : f32 to vector<2x128xf32>
    %77 = arith.addf %75, %76 : vector<2x128xf32>
    %78 = vector.extract_strided_slice %77 {offsets = [0, 0], sizes = [2, 32], strides = [1, 1]} : vector<2x128xf32> to vector<2x32xf32>
    %79 = vector.extract_strided_slice %77 {offsets = [0, 32], sizes = [2, 32], strides = [1, 1]} : vector<2x128xf32> to vector<2x32xf32>
    %80 = vector.extract_strided_slice %77 {offsets = [0, 96], sizes = [2, 32], strides = [1, 1]} : vector<2x128xf32> to vector<2x32xf32>
    %81 = vector.extract_strided_slice %70 {offsets = [0, 64], sizes = [2, 32], strides = [1, 1]} : vector<2x128xf32> to vector<2x32xf32>
    %82 = math.tanh %81 : vector<2x32xf32>
    %83 = arith.mulf %79, %65 : vector<2x32xf32>
    %84 = arith.mulf %78, %82 : vector<2x32xf32>
    %85 = arith.addf %83, %84 : vector<2x32xf32>
    %86 = math.tanh %85 : vector<2x32xf32>
    %87 = arith.mulf %80, %86 : vector<2x32xf32>
    %88 = vector.extract_strided_slice %7 {offsets = [8, 0], sizes = [2, 128], strides = [1, 1]} : vector<16x128xf32> to vector<2x128xf32>
    %cst_22 = arith.constant dense<0.000000e+00> : vector<2x128xf32>
    %89 = tpu.matmul %87, %2, %cst_22 {dimension_numbers = #tpu.dot_dimension_numbers<[1], [0], [0], [1], [0, 0, 1, 1], [], []>} : vector<2x32xf32>, vector<32x128xf32>, vector<2x128xf32> -> vector<2x128xf32>
    %90 = arith.addf %88, %89 : vector<2x128xf32>
    %cst_23 = arith.constant 5.000000e-01 : f32
    %91 = vector.broadcast %cst_23 : f32 to vector<2x128xf32>
    %92 = arith.mulf %90, %91 : vector<2x128xf32>
    %93 = math.tanh %92 : vector<2x128xf32>
    %cst_24 = arith.constant 5.000000e-01 : f32
    %94 = vector.broadcast %cst_24 : f32 to vector<2x128xf32>
    %95 = arith.mulf %93, %94 : vector<2x128xf32>
    %cst_25 = arith.constant 5.000000e-01 : f32
    %96 = vector.broadcast %cst_25 : f32 to vector<2x128xf32>
    %97 = arith.addf %95, %96 : vector<2x128xf32>
    %98 = vector.extract_strided_slice %97 {offsets = [0, 0], sizes = [2, 32], strides = [1, 1]} : vector<2x128xf32> to vector<2x32xf32>
    %99 = vector.extract_strided_slice %97 {offsets = [0, 32], sizes = [2, 32], strides = [1, 1]} : vector<2x128xf32> to vector<2x32xf32>
    %100 = vector.extract_strided_slice %97 {offsets = [0, 96], sizes = [2, 32], strides = [1, 1]} : vector<2x128xf32> to vector<2x32xf32>
    %101 = vector.extract_strided_slice %90 {offsets = [0, 64], sizes = [2, 32], strides = [1, 1]} : vector<2x128xf32> to vector<2x32xf32>
    %102 = math.tanh %101 : vector<2x32xf32>
    %103 = arith.mulf %99, %85 : vector<2x32xf32>
    %104 = arith.mulf %98, %102 : vector<2x32xf32>
    %105 = arith.addf %103, %104 : vector<2x32xf32>
    %106 = math.tanh %105 : vector<2x32xf32>
    %107 = arith.mulf %100, %106 : vector<2x32xf32>
    %108 = vector.extract_strided_slice %7 {offsets = [10, 0], sizes = [2, 128], strides = [1, 1]} : vector<16x128xf32> to vector<2x128xf32>
    %cst_26 = arith.constant dense<0.000000e+00> : vector<2x128xf32>
    %109 = tpu.matmul %107, %2, %cst_26 {dimension_numbers = #tpu.dot_dimension_numbers<[1], [0], [0], [1], [0, 0, 1, 1], [], []>} : vector<2x32xf32>, vector<32x128xf32>, vector<2x128xf32> -> vector<2x128xf32>
    %110 = arith.addf %108, %109 : vector<2x128xf32>
    %cst_27 = arith.constant 5.000000e-01 : f32
    %111 = vector.broadcast %cst_27 : f32 to vector<2x128xf32>
    %112 = arith.mulf %110, %111 : vector<2x128xf32>
    %113 = math.tanh %112 : vector<2x128xf32>
    %cst_28 = arith.constant 5.000000e-01 : f32
    %114 = vector.broadcast %cst_28 : f32 to vector<2x128xf32>
    %115 = arith.mulf %113, %114 : vector<2x128xf32>
    %cst_29 = arith.constant 5.000000e-01 : f32
    %116 = vector.broadcast %cst_29 : f32 to vector<2x128xf32>
    %117 = arith.addf %115, %116 : vector<2x128xf32>
    %118 = vector.extract_strided_slice %117 {offsets = [0, 0], sizes = [2, 32], strides = [1, 1]} : vector<2x128xf32> to vector<2x32xf32>
    %119 = vector.extract_strided_slice %117 {offsets = [0, 32], sizes = [2, 32], strides = [1, 1]} : vector<2x128xf32> to vector<2x32xf32>
    %120 = vector.extract_strided_slice %117 {offsets = [0, 96], sizes = [2, 32], strides = [1, 1]} : vector<2x128xf32> to vector<2x32xf32>
    %121 = vector.extract_strided_slice %110 {offsets = [0, 64], sizes = [2, 32], strides = [1, 1]} : vector<2x128xf32> to vector<2x32xf32>
    %122 = math.tanh %121 : vector<2x32xf32>
    %123 = arith.mulf %119, %105 : vector<2x32xf32>
    %124 = arith.mulf %118, %122 : vector<2x32xf32>
    %125 = arith.addf %123, %124 : vector<2x32xf32>
    %126 = math.tanh %125 : vector<2x32xf32>
    %127 = arith.mulf %120, %126 : vector<2x32xf32>
    %128 = vector.extract_strided_slice %7 {offsets = [12, 0], sizes = [2, 128], strides = [1, 1]} : vector<16x128xf32> to vector<2x128xf32>
    %cst_30 = arith.constant dense<0.000000e+00> : vector<2x128xf32>
    %129 = tpu.matmul %127, %2, %cst_30 {dimension_numbers = #tpu.dot_dimension_numbers<[1], [0], [0], [1], [0, 0, 1, 1], [], []>} : vector<2x32xf32>, vector<32x128xf32>, vector<2x128xf32> -> vector<2x128xf32>
    %130 = arith.addf %128, %129 : vector<2x128xf32>
    %cst_31 = arith.constant 5.000000e-01 : f32
    %131 = vector.broadcast %cst_31 : f32 to vector<2x128xf32>
    %132 = arith.mulf %130, %131 : vector<2x128xf32>
    %133 = math.tanh %132 : vector<2x128xf32>
    %cst_32 = arith.constant 5.000000e-01 : f32
    %134 = vector.broadcast %cst_32 : f32 to vector<2x128xf32>
    %135 = arith.mulf %133, %134 : vector<2x128xf32>
    %cst_33 = arith.constant 5.000000e-01 : f32
    %136 = vector.broadcast %cst_33 : f32 to vector<2x128xf32>
    %137 = arith.addf %135, %136 : vector<2x128xf32>
    %138 = vector.extract_strided_slice %137 {offsets = [0, 0], sizes = [2, 32], strides = [1, 1]} : vector<2x128xf32> to vector<2x32xf32>
    %139 = vector.extract_strided_slice %137 {offsets = [0, 32], sizes = [2, 32], strides = [1, 1]} : vector<2x128xf32> to vector<2x32xf32>
    %140 = vector.extract_strided_slice %137 {offsets = [0, 96], sizes = [2, 32], strides = [1, 1]} : vector<2x128xf32> to vector<2x32xf32>
    %141 = vector.extract_strided_slice %130 {offsets = [0, 64], sizes = [2, 32], strides = [1, 1]} : vector<2x128xf32> to vector<2x32xf32>
    %142 = math.tanh %141 : vector<2x32xf32>
    %143 = arith.mulf %139, %125 : vector<2x32xf32>
    %144 = arith.mulf %138, %142 : vector<2x32xf32>
    %145 = arith.addf %143, %144 : vector<2x32xf32>
    %146 = math.tanh %145 : vector<2x32xf32>
    %147 = arith.mulf %140, %146 : vector<2x32xf32>
    %148 = vector.extract_strided_slice %7 {offsets = [14, 0], sizes = [2, 128], strides = [1, 1]} : vector<16x128xf32> to vector<2x128xf32>
    %cst_34 = arith.constant dense<0.000000e+00> : vector<2x128xf32>
    %149 = tpu.matmul %147, %2, %cst_34 {dimension_numbers = #tpu.dot_dimension_numbers<[1], [0], [0], [1], [0, 0, 1, 1], [], []>} : vector<2x32xf32>, vector<32x128xf32>, vector<2x128xf32> -> vector<2x128xf32>
    %150 = arith.addf %148, %149 : vector<2x128xf32>
    %cst_35 = arith.constant 5.000000e-01 : f32
    %151 = vector.broadcast %cst_35 : f32 to vector<2x128xf32>
    %152 = arith.mulf %150, %151 : vector<2x128xf32>
    %153 = math.tanh %152 : vector<2x128xf32>
    %cst_36 = arith.constant 5.000000e-01 : f32
    %154 = vector.broadcast %cst_36 : f32 to vector<2x128xf32>
    %155 = arith.mulf %153, %154 : vector<2x128xf32>
    %cst_37 = arith.constant 5.000000e-01 : f32
    %156 = vector.broadcast %cst_37 : f32 to vector<2x128xf32>
    %157 = arith.addf %155, %156 : vector<2x128xf32>
    %158 = vector.extract_strided_slice %157 {offsets = [0, 0], sizes = [2, 32], strides = [1, 1]} : vector<2x128xf32> to vector<2x32xf32>
    %159 = vector.extract_strided_slice %157 {offsets = [0, 32], sizes = [2, 32], strides = [1, 1]} : vector<2x128xf32> to vector<2x32xf32>
    %160 = vector.extract_strided_slice %157 {offsets = [0, 96], sizes = [2, 32], strides = [1, 1]} : vector<2x128xf32> to vector<2x32xf32>
    %161 = vector.extract_strided_slice %150 {offsets = [0, 64], sizes = [2, 32], strides = [1, 1]} : vector<2x128xf32> to vector<2x32xf32>
    %162 = math.tanh %161 : vector<2x32xf32>
    %163 = arith.mulf %159, %145 : vector<2x32xf32>
    %164 = arith.mulf %158, %162 : vector<2x32xf32>
    %165 = arith.addf %163, %164 : vector<2x32xf32>
    %166 = math.tanh %165 : vector<2x32xf32>
    %167 = arith.mulf %160, %166 : vector<2x32xf32>
    %c56 = arith.constant 56 : index
    %c0_38 = arith.constant 0 : index
    %168 = vector.load %arg1[%c56, %c0_38] : memref<192x128xf32, #tpu.memory_space<vmem>>, vector<32x128xf32>
    %c88 = arith.constant 88 : index
    %c0_39 = arith.constant 0 : index
    %169 = vector.load %arg1[%c88, %c0_39] : memref<192x128xf32, #tpu.memory_space<vmem>>, vector<32x128xf32>
    %c120 = arith.constant 120 : index
    %c0_40 = arith.constant 0 : index
    %170 = vector.load %arg1[%c120, %c0_40] : memref<192x128xf32, #tpu.memory_space<vmem>>, vector<1x128xf32>
    %171 = vector.shape_cast %170 : vector<1x128xf32> to vector<1x128xf32>
    %172 = vector.broadcast %171 : vector<1x128xf32> to vector<2x128xf32>
    %cst_41 = arith.constant dense<0.000000e+00> : vector<2x128xf32>
    %173 = tpu.matmul %27, %168, %cst_41 {dimension_numbers = #tpu.dot_dimension_numbers<[1], [0], [0], [1], [0, 0, 1, 1], [], []>} : vector<2x32xf32>, vector<32x128xf32>, vector<2x128xf32> -> vector<2x128xf32>
    %174 = arith.addf %173, %172 : vector<2x128xf32>
    %cst_42 = arith.constant dense<0.000000e+00> : vector<2x128xf32>
    %175 = tpu.matmul %0, %169, %cst_42 {dimension_numbers = #tpu.dot_dimension_numbers<[1], [0], [0], [1], [0, 0, 1, 1], [], []>} : vector<2x32xf32>, vector<32x128xf32>, vector<2x128xf32> -> vector<2x128xf32>
    %176 = arith.addf %174, %175 : vector<2x128xf32>
    %cst_43 = arith.constant 5.000000e-01 : f32
    %177 = vector.broadcast %cst_43 : f32 to vector<2x128xf32>
    %178 = arith.mulf %176, %177 : vector<2x128xf32>
    %179 = math.tanh %178 : vector<2x128xf32>
    %cst_44 = arith.constant 5.000000e-01 : f32
    %180 = vector.broadcast %cst_44 : f32 to vector<2x128xf32>
    %181 = arith.mulf %179, %180 : vector<2x128xf32>
    %cst_45 = arith.constant 5.000000e-01 : f32
    %182 = vector.broadcast %cst_45 : f32 to vector<2x128xf32>
    %183 = arith.addf %181, %182 : vector<2x128xf32>
    %184 = vector.extract_strided_slice %183 {offsets = [0, 0], sizes = [2, 32], strides = [1, 1]} : vector<2x128xf32> to vector<2x32xf32>
    %185 = vector.extract_strided_slice %183 {offsets = [0, 32], sizes = [2, 32], strides = [1, 1]} : vector<2x128xf32> to vector<2x32xf32>
    %186 = vector.extract_strided_slice %183 {offsets = [0, 96], sizes = [2, 32], strides = [1, 1]} : vector<2x128xf32> to vector<2x32xf32>
    %187 = vector.extract_strided_slice %176 {offsets = [0, 64], sizes = [2, 32], strides = [1, 1]} : vector<2x128xf32> to vector<2x32xf32>
    %188 = math.tanh %187 : vector<2x32xf32>
    %189 = arith.mulf %185, %0 : vector<2x32xf32>
    %190 = arith.mulf %184, %188 : vector<2x32xf32>
    %191 = arith.addf %189, %190 : vector<2x32xf32>
    %192 = math.tanh %191 : vector<2x32xf32>
    %193 = arith.mulf %186, %192 : vector<2x32xf32>
    %cst_46 = arith.constant dense<0.000000e+00> : vector<2x128xf32>
    %194 = tpu.matmul %47, %168, %cst_46 {dimension_numbers = #tpu.dot_dimension_numbers<[1], [0], [0], [1], [0, 0, 1, 1], [], []>} : vector<2x32xf32>, vector<32x128xf32>, vector<2x128xf32> -> vector<2x128xf32>
    %195 = arith.addf %194, %172 : vector<2x128xf32>
    %cst_47 = arith.constant dense<0.000000e+00> : vector<2x128xf32>
    %196 = tpu.matmul %193, %169, %cst_47 {dimension_numbers = #tpu.dot_dimension_numbers<[1], [0], [0], [1], [0, 0, 1, 1], [], []>} : vector<2x32xf32>, vector<32x128xf32>, vector<2x128xf32> -> vector<2x128xf32>
    %197 = arith.addf %195, %196 : vector<2x128xf32>
    %cst_48 = arith.constant 5.000000e-01 : f32
    %198 = vector.broadcast %cst_48 : f32 to vector<2x128xf32>
    %199 = arith.mulf %197, %198 : vector<2x128xf32>
    %200 = math.tanh %199 : vector<2x128xf32>
    %cst_49 = arith.constant 5.000000e-01 : f32
    %201 = vector.broadcast %cst_49 : f32 to vector<2x128xf32>
    %202 = arith.mulf %200, %201 : vector<2x128xf32>
    %cst_50 = arith.constant 5.000000e-01 : f32
    %203 = vector.broadcast %cst_50 : f32 to vector<2x128xf32>
    %204 = arith.addf %202, %203 : vector<2x128xf32>
    %205 = vector.extract_strided_slice %204 {offsets = [0, 0], sizes = [2, 32], strides = [1, 1]} : vector<2x128xf32> to vector<2x32xf32>
    %206 = vector.extract_strided_slice %204 {offsets = [0, 32], sizes = [2, 32], strides = [1, 1]} : vector<2x128xf32> to vector<2x32xf32>
    %207 = vector.extract_strided_slice %204 {offsets = [0, 96], sizes = [2, 32], strides = [1, 1]} : vector<2x128xf32> to vector<2x32xf32>
    %208 = vector.extract_strided_slice %197 {offsets = [0, 64], sizes = [2, 32], strides = [1, 1]} : vector<2x128xf32> to vector<2x32xf32>
    %209 = math.tanh %208 : vector<2x32xf32>
    %210 = arith.mulf %206, %191 : vector<2x32xf32>
    %211 = arith.mulf %205, %209 : vector<2x32xf32>
    %212 = arith.addf %210, %211 : vector<2x32xf32>
    %213 = math.tanh %212 : vector<2x32xf32>
    %214 = arith.mulf %207, %213 : vector<2x32xf32>
    %cst_51 = arith.constant dense<0.000000e+00> : vector<2x128xf32>
    %215 = tpu.matmul %67, %168, %cst_51 {dimension_numbers = #tpu.dot_dimension_numbers<[1], [0], [0], [1], [0, 0, 1, 1], [], []>} : vector<2x32xf32>, vector<32x128xf32>, vector<2x128xf32> -> vector<2x128xf32>
    %216 = arith.addf %215, %172 : vector<2x128xf32>
    %cst_52 = arith.constant dense<0.000000e+00> : vector<2x128xf32>
    %217 = tpu.matmul %214, %169, %cst_52 {dimension_numbers = #tpu.dot_dimension_numbers<[1], [0], [0], [1], [0, 0, 1, 1], [], []>} : vector<2x32xf32>, vector<32x128xf32>, vector<2x128xf32> -> vector<2x128xf32>
    %218 = arith.addf %216, %217 : vector<2x128xf32>
    %cst_53 = arith.constant 5.000000e-01 : f32
    %219 = vector.broadcast %cst_53 : f32 to vector<2x128xf32>
    %220 = arith.mulf %218, %219 : vector<2x128xf32>
    %221 = math.tanh %220 : vector<2x128xf32>
    %cst_54 = arith.constant 5.000000e-01 : f32
    %222 = vector.broadcast %cst_54 : f32 to vector<2x128xf32>
    %223 = arith.mulf %221, %222 : vector<2x128xf32>
    %cst_55 = arith.constant 5.000000e-01 : f32
    %224 = vector.broadcast %cst_55 : f32 to vector<2x128xf32>
    %225 = arith.addf %223, %224 : vector<2x128xf32>
    %226 = vector.extract_strided_slice %225 {offsets = [0, 0], sizes = [2, 32], strides = [1, 1]} : vector<2x128xf32> to vector<2x32xf32>
    %227 = vector.extract_strided_slice %225 {offsets = [0, 32], sizes = [2, 32], strides = [1, 1]} : vector<2x128xf32> to vector<2x32xf32>
    %228 = vector.extract_strided_slice %225 {offsets = [0, 96], sizes = [2, 32], strides = [1, 1]} : vector<2x128xf32> to vector<2x32xf32>
    %229 = vector.extract_strided_slice %218 {offsets = [0, 64], sizes = [2, 32], strides = [1, 1]} : vector<2x128xf32> to vector<2x32xf32>
    %230 = math.tanh %229 : vector<2x32xf32>
    %231 = arith.mulf %227, %212 : vector<2x32xf32>
    %232 = arith.mulf %226, %230 : vector<2x32xf32>
    %233 = arith.addf %231, %232 : vector<2x32xf32>
    %234 = math.tanh %233 : vector<2x32xf32>
    %235 = arith.mulf %228, %234 : vector<2x32xf32>
    %cst_56 = arith.constant dense<0.000000e+00> : vector<2x128xf32>
    %236 = tpu.matmul %87, %168, %cst_56 {dimension_numbers = #tpu.dot_dimension_numbers<[1], [0], [0], [1], [0, 0, 1, 1], [], []>} : vector<2x32xf32>, vector<32x128xf32>, vector<2x128xf32> -> vector<2x128xf32>
    %237 = arith.addf %236, %172 : vector<2x128xf32>
    %cst_57 = arith.constant dense<0.000000e+00> : vector<2x128xf32>
    %238 = tpu.matmul %235, %169, %cst_57 {dimension_numbers = #tpu.dot_dimension_numbers<[1], [0], [0], [1], [0, 0, 1, 1], [], []>} : vector<2x32xf32>, vector<32x128xf32>, vector<2x128xf32> -> vector<2x128xf32>
    %239 = arith.addf %237, %238 : vector<2x128xf32>
    %cst_58 = arith.constant 5.000000e-01 : f32
    %240 = vector.broadcast %cst_58 : f32 to vector<2x128xf32>
    %241 = arith.mulf %239, %240 : vector<2x128xf32>
    %242 = math.tanh %241 : vector<2x128xf32>
    %cst_59 = arith.constant 5.000000e-01 : f32
    %243 = vector.broadcast %cst_59 : f32 to vector<2x128xf32>
    %244 = arith.mulf %242, %243 : vector<2x128xf32>
    %cst_60 = arith.constant 5.000000e-01 : f32
    %245 = vector.broadcast %cst_60 : f32 to vector<2x128xf32>
    %246 = arith.addf %244, %245 : vector<2x128xf32>
    %247 = vector.extract_strided_slice %246 {offsets = [0, 0], sizes = [2, 32], strides = [1, 1]} : vector<2x128xf32> to vector<2x32xf32>
    %248 = vector.extract_strided_slice %246 {offsets = [0, 32], sizes = [2, 32], strides = [1, 1]} : vector<2x128xf32> to vector<2x32xf32>
    %249 = vector.extract_strided_slice %246 {offsets = [0, 96], sizes = [2, 32], strides = [1, 1]} : vector<2x128xf32> to vector<2x32xf32>
    %250 = vector.extract_strided_slice %239 {offsets = [0, 64], sizes = [2, 32], strides = [1, 1]} : vector<2x128xf32> to vector<2x32xf32>
    %251 = math.tanh %250 : vector<2x32xf32>
    %252 = arith.mulf %248, %233 : vector<2x32xf32>
    %253 = arith.mulf %247, %251 : vector<2x32xf32>
    %254 = arith.addf %252, %253 : vector<2x32xf32>
    %255 = math.tanh %254 : vector<2x32xf32>
    %256 = arith.mulf %249, %255 : vector<2x32xf32>
    %cst_61 = arith.constant dense<0.000000e+00> : vector<2x128xf32>
    %257 = tpu.matmul %107, %168, %cst_61 {dimension_numbers = #tpu.dot_dimension_numbers<[1], [0], [0], [1], [0, 0, 1, 1], [], []>} : vector<2x32xf32>, vector<32x128xf32>, vector<2x128xf32> -> vector<2x128xf32>
    %258 = arith.addf %257, %172 : vector<2x128xf32>
    %cst_62 = arith.constant dense<0.000000e+00> : vector<2x128xf32>
    %259 = tpu.matmul %256, %169, %cst_62 {dimension_numbers = #tpu.dot_dimension_numbers<[1], [0], [0], [1], [0, 0, 1, 1], [], []>} : vector<2x32xf32>, vector<32x128xf32>, vector<2x128xf32> -> vector<2x128xf32>
    %260 = arith.addf %258, %259 : vector<2x128xf32>
    %cst_63 = arith.constant 5.000000e-01 : f32
    %261 = vector.broadcast %cst_63 : f32 to vector<2x128xf32>
    %262 = arith.mulf %260, %261 : vector<2x128xf32>
    %263 = math.tanh %262 : vector<2x128xf32>
    %cst_64 = arith.constant 5.000000e-01 : f32
    %264 = vector.broadcast %cst_64 : f32 to vector<2x128xf32>
    %265 = arith.mulf %263, %264 : vector<2x128xf32>
    %cst_65 = arith.constant 5.000000e-01 : f32
    %266 = vector.broadcast %cst_65 : f32 to vector<2x128xf32>
    %267 = arith.addf %265, %266 : vector<2x128xf32>
    %268 = vector.extract_strided_slice %267 {offsets = [0, 0], sizes = [2, 32], strides = [1, 1]} : vector<2x128xf32> to vector<2x32xf32>
    %269 = vector.extract_strided_slice %267 {offsets = [0, 32], sizes = [2, 32], strides = [1, 1]} : vector<2x128xf32> to vector<2x32xf32>
    %270 = vector.extract_strided_slice %267 {offsets = [0, 96], sizes = [2, 32], strides = [1, 1]} : vector<2x128xf32> to vector<2x32xf32>
    %271 = vector.extract_strided_slice %260 {offsets = [0, 64], sizes = [2, 32], strides = [1, 1]} : vector<2x128xf32> to vector<2x32xf32>
    %272 = math.tanh %271 : vector<2x32xf32>
    %273 = arith.mulf %269, %254 : vector<2x32xf32>
    %274 = arith.mulf %268, %272 : vector<2x32xf32>
    %275 = arith.addf %273, %274 : vector<2x32xf32>
    %276 = math.tanh %275 : vector<2x32xf32>
    %277 = arith.mulf %270, %276 : vector<2x32xf32>
    %cst_66 = arith.constant dense<0.000000e+00> : vector<2x128xf32>
    %278 = tpu.matmul %127, %168, %cst_66 {dimension_numbers = #tpu.dot_dimension_numbers<[1], [0], [0], [1], [0, 0, 1, 1], [], []>} : vector<2x32xf32>, vector<32x128xf32>, vector<2x128xf32> -> vector<2x128xf32>
    %279 = arith.addf %278, %172 : vector<2x128xf32>
    %cst_67 = arith.constant dense<0.000000e+00> : vector<2x128xf32>
    %280 = tpu.matmul %277, %169, %cst_67 {dimension_numbers = #tpu.dot_dimension_numbers<[1], [0], [0], [1], [0, 0, 1, 1], [], []>} : vector<2x32xf32>, vector<32x128xf32>, vector<2x128xf32> -> vector<2x128xf32>
    %281 = arith.addf %279, %280 : vector<2x128xf32>
    %cst_68 = arith.constant 5.000000e-01 : f32
    %282 = vector.broadcast %cst_68 : f32 to vector<2x128xf32>
    %283 = arith.mulf %281, %282 : vector<2x128xf32>
    %284 = math.tanh %283 : vector<2x128xf32>
    %cst_69 = arith.constant 5.000000e-01 : f32
    %285 = vector.broadcast %cst_69 : f32 to vector<2x128xf32>
    %286 = arith.mulf %284, %285 : vector<2x128xf32>
    %cst_70 = arith.constant 5.000000e-01 : f32
    %287 = vector.broadcast %cst_70 : f32 to vector<2x128xf32>
    %288 = arith.addf %286, %287 : vector<2x128xf32>
    %289 = vector.extract_strided_slice %288 {offsets = [0, 0], sizes = [2, 32], strides = [1, 1]} : vector<2x128xf32> to vector<2x32xf32>
    %290 = vector.extract_strided_slice %288 {offsets = [0, 32], sizes = [2, 32], strides = [1, 1]} : vector<2x128xf32> to vector<2x32xf32>
    %291 = vector.extract_strided_slice %288 {offsets = [0, 96], sizes = [2, 32], strides = [1, 1]} : vector<2x128xf32> to vector<2x32xf32>
    %292 = vector.extract_strided_slice %281 {offsets = [0, 64], sizes = [2, 32], strides = [1, 1]} : vector<2x128xf32> to vector<2x32xf32>
    %293 = math.tanh %292 : vector<2x32xf32>
    %294 = arith.mulf %290, %275 : vector<2x32xf32>
    %295 = arith.mulf %289, %293 : vector<2x32xf32>
    %296 = arith.addf %294, %295 : vector<2x32xf32>
    %297 = math.tanh %296 : vector<2x32xf32>
    %298 = arith.mulf %291, %297 : vector<2x32xf32>
    %cst_71 = arith.constant dense<0.000000e+00> : vector<2x128xf32>
    %299 = tpu.matmul %147, %168, %cst_71 {dimension_numbers = #tpu.dot_dimension_numbers<[1], [0], [0], [1], [0, 0, 1, 1], [], []>} : vector<2x32xf32>, vector<32x128xf32>, vector<2x128xf32> -> vector<2x128xf32>
    %300 = arith.addf %299, %172 : vector<2x128xf32>
    %cst_72 = arith.constant dense<0.000000e+00> : vector<2x128xf32>
    %301 = tpu.matmul %298, %169, %cst_72 {dimension_numbers = #tpu.dot_dimension_numbers<[1], [0], [0], [1], [0, 0, 1, 1], [], []>} : vector<2x32xf32>, vector<32x128xf32>, vector<2x128xf32> -> vector<2x128xf32>
    %302 = arith.addf %300, %301 : vector<2x128xf32>
    %cst_73 = arith.constant 5.000000e-01 : f32
    %303 = vector.broadcast %cst_73 : f32 to vector<2x128xf32>
    %304 = arith.mulf %302, %303 : vector<2x128xf32>
    %305 = math.tanh %304 : vector<2x128xf32>
    %cst_74 = arith.constant 5.000000e-01 : f32
    %306 = vector.broadcast %cst_74 : f32 to vector<2x128xf32>
    %307 = arith.mulf %305, %306 : vector<2x128xf32>
    %cst_75 = arith.constant 5.000000e-01 : f32
    %308 = vector.broadcast %cst_75 : f32 to vector<2x128xf32>
    %309 = arith.addf %307, %308 : vector<2x128xf32>
    %310 = vector.extract_strided_slice %309 {offsets = [0, 0], sizes = [2, 32], strides = [1, 1]} : vector<2x128xf32> to vector<2x32xf32>
    %311 = vector.extract_strided_slice %309 {offsets = [0, 32], sizes = [2, 32], strides = [1, 1]} : vector<2x128xf32> to vector<2x32xf32>
    %312 = vector.extract_strided_slice %309 {offsets = [0, 96], sizes = [2, 32], strides = [1, 1]} : vector<2x128xf32> to vector<2x32xf32>
    %313 = vector.extract_strided_slice %302 {offsets = [0, 64], sizes = [2, 32], strides = [1, 1]} : vector<2x128xf32> to vector<2x32xf32>
    %314 = math.tanh %313 : vector<2x32xf32>
    %315 = arith.mulf %311, %296 : vector<2x32xf32>
    %316 = arith.mulf %310, %314 : vector<2x32xf32>
    %317 = arith.addf %315, %316 : vector<2x32xf32>
    %318 = math.tanh %317 : vector<2x32xf32>
    %319 = arith.mulf %312, %318 : vector<2x32xf32>
    %cst_76 = arith.constant dense<0.000000e+00> : vector<2x128xf32>
    %320 = tpu.matmul %167, %168, %cst_76 {dimension_numbers = #tpu.dot_dimension_numbers<[1], [0], [0], [1], [0, 0, 1, 1], [], []>} : vector<2x32xf32>, vector<32x128xf32>, vector<2x128xf32> -> vector<2x128xf32>
    %321 = arith.addf %320, %172 : vector<2x128xf32>
    %cst_77 = arith.constant dense<0.000000e+00> : vector<2x128xf32>
    %322 = tpu.matmul %319, %169, %cst_77 {dimension_numbers = #tpu.dot_dimension_numbers<[1], [0], [0], [1], [0, 0, 1, 1], [], []>} : vector<2x32xf32>, vector<32x128xf32>, vector<2x128xf32> -> vector<2x128xf32>
    %323 = arith.addf %321, %322 : vector<2x128xf32>
    %cst_78 = arith.constant 5.000000e-01 : f32
    %324 = vector.broadcast %cst_78 : f32 to vector<2x128xf32>
    %325 = arith.mulf %323, %324 : vector<2x128xf32>
    %326 = math.tanh %325 : vector<2x128xf32>
    %cst_79 = arith.constant 5.000000e-01 : f32
    %327 = vector.broadcast %cst_79 : f32 to vector<2x128xf32>
    %328 = arith.mulf %326, %327 : vector<2x128xf32>
    %cst_80 = arith.constant 5.000000e-01 : f32
    %329 = vector.broadcast %cst_80 : f32 to vector<2x128xf32>
    %330 = arith.addf %328, %329 : vector<2x128xf32>
    %331 = vector.extract_strided_slice %330 {offsets = [0, 0], sizes = [2, 32], strides = [1, 1]} : vector<2x128xf32> to vector<2x32xf32>
    %332 = vector.extract_strided_slice %330 {offsets = [0, 32], sizes = [2, 32], strides = [1, 1]} : vector<2x128xf32> to vector<2x32xf32>
    %333 = vector.extract_strided_slice %330 {offsets = [0, 96], sizes = [2, 32], strides = [1, 1]} : vector<2x128xf32> to vector<2x32xf32>
    %334 = vector.extract_strided_slice %323 {offsets = [0, 64], sizes = [2, 32], strides = [1, 1]} : vector<2x128xf32> to vector<2x32xf32>
    %335 = math.tanh %334 : vector<2x32xf32>
    %336 = arith.mulf %332, %317 : vector<2x32xf32>
    %337 = arith.mulf %331, %335 : vector<2x32xf32>
    %338 = arith.addf %336, %337 : vector<2x32xf32>
    %339 = math.tanh %338 : vector<2x32xf32>
    %340 = arith.mulf %333, %339 : vector<2x32xf32>
    %c128 = arith.constant 128 : index
    %c0_81 = arith.constant 0 : index
    %341 = vector.load %arg1[%c128, %c0_81] : memref<192x128xf32, #tpu.memory_space<vmem>>, vector<32x128xf32>
    %342 = vector.extract_strided_slice %341 {offsets = [0, 0], sizes = [32, 16], strides = [1, 1]} : vector<32x128xf32> to vector<32x16xf32>
    %c160 = arith.constant 160 : index
    %c0_82 = arith.constant 0 : index
    %343 = vector.load %arg1[%c160, %c0_82] : memref<192x128xf32, #tpu.memory_space<vmem>>, vector<1x128xf32>
    %344 = vector.extract_strided_slice %343 {offsets = [0, 0], sizes = [1, 16], strides = [1, 1]} : vector<1x128xf32> to vector<1x16xf32>
    %c168 = arith.constant 168 : index
    %c0_83 = arith.constant 0 : index
    %345 = vector.load %arg1[%c168, %c0_83] : memref<192x128xf32, #tpu.memory_space<vmem>>, vector<16x128xf32>
    %346 = vector.extract_strided_slice %345 {offsets = [0, 0], sizes = [16, 4], strides = [1, 1]} : vector<16x128xf32> to vector<16x4xf32>
    %c184 = arith.constant 184 : index
    %c0_84 = arith.constant 0 : index
    %347 = vector.load %arg1[%c184, %c0_84] : memref<192x128xf32, #tpu.memory_space<vmem>>, vector<1x128xf32>
    %348 = vector.extract_strided_slice %347 {offsets = [0, 0], sizes = [1, 4], strides = [1, 1]} : vector<1x128xf32> to vector<1x4xf32>
    %cst_85 = arith.constant dense<0.000000e+00> : vector<2x16xf32>
    %349 = tpu.matmul %340, %342, %cst_85 {dimension_numbers = #tpu.dot_dimension_numbers<[1], [0], [0], [1], [0, 0, 1, 1], [], []>} : vector<2x32xf32>, vector<32x16xf32>, vector<2x16xf32> -> vector<2x16xf32>
    %350 = vector.broadcast %344 : vector<1x16xf32> to vector<2x16xf32>
    %351 = arith.addf %349, %350 : vector<2x16xf32>
    %cst_86 = arith.constant 0.000000e+00 : f32
    %352 = vector.broadcast %cst_86 : f32 to vector<2x16xf32>
    %353 = arith.maximumf %351, %352 : vector<2x16xf32>
    %cst_87 = arith.constant dense<0.000000e+00> : vector<2x4xf32>
    %354 = tpu.matmul %353, %346, %cst_87 {dimension_numbers = #tpu.dot_dimension_numbers<[1], [0], [0], [1], [0, 0, 1, 1], [], []>} : vector<2x16xf32>, vector<16x4xf32>, vector<2x4xf32> -> vector<2x4xf32>
    %355 = vector.broadcast %348 : vector<1x4xf32> to vector<2x4xf32>
    %356 = arith.addf %354, %355 : vector<2x4xf32>
    %c0_88 = arith.constant 0 : index
    %c0_89 = arith.constant 0 : index
    %357 = vector.load %arg2[%c0_88, %c0_89] : memref<2x4xf32, #tpu.memory_space<vmem>>, vector<2x4xf32>
    tpu.vector_store %arg2[%c0_88, %c0_89], %356 {strides = array<i32>} : memref<2x4xf32, #tpu.memory_space<vmem>>, vector<2x4xf32>,
    return
  }
}

</mosaic_0001>

<llo_original>
// kernel: lstm_forward.1
$region0: #{lstm_forward.1}
  #allocation0 [shape = 'u32[]', space=smem, size = 0x4, offset = 0x4, fixed_abs, tag = 'smem constant byte address 0x4 - core index']
  #allocation1 [shape = 'u32[144,128]{1,0:T(1,128)}', space=vmem, size = 0x12000, scoped, tag = 'internal scratch']
  %s0 = inlined_call_operand.vmem [shape: f32[16,16], index: 0, kind: input, shape index: {}]
  %s1 = inlined_call_operand.hbm [shape: f32[192,128], index: 1, kind: input, shape index: {}]
  %s2 = inlined_call_operand.hbm [shape: f32[2,4], index: 2, kind: output, shape index: {}]
  %s3 = sld [smem:[#allocation0]]
  $region22: #{lstm_forward.1} parent=0
    _
  %s5 = ssub.s32 1, %s3
  %s6 = scalar_select 0, %s5, %s3
  $region1: #{lstm_forward.1} parent=0
    #allocation2 [shape = 'u8[98304]{0}', space=vmem, size = 0x18000, scoped, tag = 'input window, operand 1, single buffered']
    #allocation3 [shape = 's32[1]{0}', space=sflag, size = 0x4, scoped, tag = 'scoped memory for lstm_forward.1']
    #allocation4 [shape = 's32[1]{0}', space=sflag, size = 0x4, scoped, tag = 'scoped memory for lstm_forward.1']
    #allocation5 [shape = 'u8[1024]{0}', space=vmem, size = 0x400, scoped, tag = 'output window, operand 0, single buffered']
    %7 = vsyncpa [#allocation3], 0
    %8 = vsyncpa [#allocation4], 0
    // Predicated region
    $region2: #{lstm_forward.1} parent=1 // pred_check
      _
    $region3: #{lstm_forward.1} parent=1 // pred_check_branch
      %10 = sbr.rel (0) target = $region5
    $region4: #{lstm_forward.1} parent=1 // pred_region
      _
    $region5: #{lstm_forward.1} parent=1 // pred_fallthru
      _
    // Predicated region
    $region6: #{lstm_forward.1} parent=1 // pred_check
      _
    $region7: #{lstm_forward.1} parent=1 // pred_check_branch
      %12 = sbr.rel (0) target = $region9
    $region8: #{lstm_forward.1} parent=1 // pred_region
      %s14 = ssub.s32 3072, 3072
      %15 = vsyncadd [#allocation3], %s14
      %s16 = sshll.u32 [#allocation2], 4
      %s17 = int_to_ptr.vmem [resolvable:$true] %s16
      %22 = dma.hbm_to_vmem [thread:$0]  %s1, 3072, %s17, [#allocation3], 128, 128, 8
    $region9: #{lstm_forward.1} parent=1 // pred_fallthru
      _
    // Predicated region
    $region10: #{lstm_forward.1} parent=1 // pred_check
      _
    $region11: #{lstm_forward.1} parent=1 // pred_check_branch
      %24 = sbr.rel (0) target = $region13
    $region12: #{lstm_forward.1} parent=1 // pred_region
      %25 = dma.done [#allocation3], 3072
    $region13: #{lstm_forward.1} parent=1 // pred_fallthru
      _
    %v26 = vld [vmem:[#allocation2] sm:$0xff]
    %v27 = vld [vmem:[#allocation2 + $0x8] sm:$0xff]
    %v28 = vld [vmem:[#allocation2 + $0x10] sm:$0xff]
    %v29 = vld [vmem:[#allocation2 + $0x18] sm:$0xff]
    %v30 = vld [vmem:[#allocation2 + $0x20] sm:$0xff]
    %v31 = vld [vmem:[#allocation2 + $0x28] sm:$0xff]
    %v32 = vld [vmem:[#allocation2 + $0x30] sm:$0x1]
    %v33 = vld [vmem:[%s0] sm:$0xff]
    %v34 = vld [vmem:[%s0 + $0x8] sm:$0xff]
    %v35 = vlaneseq
    %v36 = vshrl.u32 %v35, 7
    %v37 = vsub.s32 0, %v36
    %v38 = vrot.slane %v32, %v37
    %vm39 = vcmask 130048
    %v41 = vsel %vm39, %v33, 0
    %v44 = vsel %vm39, %v34, 0
    %46 = vmatprep.subr.mxu0 0.0
    %47 = vmatpush1.msra.mxu0 %v26
    %48 = vmatprep.subr.mxu0 0.0
    %49 = vmatpush1.msra.mxu0 %v27
    %50 = vmatprep.subr.mxu0 0.0
    %51 = vmatpush1.msra.mxu0 0.0
    %52 = vmatprep.subr.mxu0 0.0
    %53 = vmatpush1.msra.mxu0 0.0
    %54 = vmatprep.subr.mxu0 0.0
    %55 = vmatpush1.msra.mxu0 0.0
    %56 = vmatprep.subr.mxu0 0.0
    %57 = vmatpush1.msra.mxu0 0.0
    %58 = vmatprep.subr.mxu0 0.0
    %59 = vmatpush1.msra.mxu0 0.0
    %60 = vmatprep.subr.mxu0 0.0
    %61 = vmatpush1.msra.mxu0 0.0
    %62 = vmatprep.subr.mxu0 0.0
    %63 = vmatpush1.msra.mxu0 0.0
    %64 = vmatprep.subr.mxu0 0.0
    %65 = vmatpush1.msra.mxu0 0.0
    %66 = vmatprep.subr.mxu0 0.0
    %67 = vmatpush1.msra.mxu0 0.0
    %68 = vmatprep.subr.mxu0 0.0
    %69 = vmatpush1.msra.mxu0 0.0
    %70 = vmatprep.subr.mxu0 0.0
    %71 = vmatpush1.msra.mxu0 0.0
    %72 = vmatprep.subr.mxu0 0.0
    %73 = vmatpush1.msra.mxu0 0.0
    %74 = vmatprep.subr.mxu0 0.0
    %75 = vmatpush1.msra.mxu0 0.0
    %76 = vmatprep.subr.mxu0 0.0
    %77 = vmatpush1.msra.mxu0 0.0
    %78 = vmatprep.subr.mxu0 0.0
    %79 = vmatpush1.msra.mxu0 0.0
    %80 = vmatprep.subr.mxu0 0.0
    %81 = vmatpush1.msra.mxu0 0.0
    %82 = vmatprep.subr.mxu0 0.0
    %83 = vmatpush1.msra.mxu0 0.0
    %84 = vmatprep.subr.mxu0 0.0
    %85 = vmatpush1.msra.mxu0 0.0
    %86 = vmatprep.subr.mxu0 0.0
    %87 = vmatpush1.msra.mxu0 0.0
    %88 = vmatprep.subr.mxu0 0.0
    %89 = vmatpush1.msra.mxu0 0.0
    %90 = vmatprep.subr.mxu0 0.0
    %91 = vmatpush1.msra.mxu0 0.0
    %92 = vmatprep.subr.mxu0 0.0
    %93 = vmatpush1.msra.mxu0 0.0
    %94 = vmatprep.subr.mxu0 0.0
    %95 = vmatpush1.msra.mxu0 0.0
    %96 = vmatprep.subr.mxu0 0.0
    %97 = vmatpush1.msra.mxu0 0.0
    %98 = vmatprep.subr.mxu0 0.0
    %99 = vmatpush1.msra.mxu0 0.0
    %100 = vmatprep.subr.mxu0 0.0
    %101 = vmatpush1.msra.mxu0 0.0
    %102 = vmatprep.subr.mxu0 0.0
    %103 = vmatpush1.msra.mxu0 0.0
    %104 = vmatprep.subr.mxu0 0.0
    %105 = vmatpush1.msra.mxu0 0.0
    %106 = vmatprep.subr.mxu0 0.0
    %107 = vmatpush1.msra.mxu0 0.0
    %108 = vmatprep.subr.mxu0 0.0
    %109 = vmatpush1.msra.mxu0 0.0
    %110 = vmatprep.mubr.f32.mxu0 0.0
    %111 = vmatmul.mubr.f32.gmra.mrb[0].mxu0 %v41
    %v112 = vpop.f32.mrb[0].mxu0
    %v113 = vadd.f32 %v38, %v112
    %v114 = vpop.f32.mrb[0].mxu0
    %115 = vmatprep.mubr.f32.mxu0 0.0
    %116 = vmatmul.mubr.f32.gmra.mrb[0].mxu0 %v44
    %v117 = vpop.f32.mrb[0].mxu0
    %v118 = vadd.f32 %v38, %v117
    %v119 = vpop.f32.mrb[0].mxu0
    %120 = vdwg.mxu0
    %vm121 = vcmask 261120
    %v123 = vsel %vm121, 0.0, 0
    %125 = vmatprep.subr.mxu0 0.0
    %126 = vmatpush1.msra.mxu0 %v28
    %127 = vmatprep.subr.mxu0 0.0
    %128 = vmatpush1.msra.mxu0 %v29
    %129 = vmatprep.subr.mxu0 0.0
    %130 = vmatpush1.msra.mxu0 %v30
    %131 = vmatprep.subr.mxu0 0.0
    %132 = vmatpush1.msra.mxu0 %v31
    %133 = vmatprep.subr.mxu0 0.0
    %134 = vmatpush1.msra.mxu0 0.0
    %135 = vmatprep.subr.mxu0 0.0
    %136 = vmatpush1.msra.mxu0 0.0
    %137 = vmatprep.subr.mxu0 0.0
    %138 = vmatpush1.msra.mxu0 0.0
    %139 = vmatprep.subr.mxu0 0.0
    %140 = vmatpush1.msra.mxu0 0.0
    %141 = vmatprep.subr.mxu0 0.0
    %142 = vmatpush1.msra.mxu0 0.0
    %143 = vmatprep.subr.mxu0 0.0
    %144 = vmatpush1.msra.mxu0 0.0
    %145 = vmatprep.subr.mxu0 0.0
    %146 = vmatpush1.msra.mxu0 0.0
    %147 = vmatprep.subr.mxu0 0.0
    %148 = vmatpush1.msra.mxu0 0.0
    %149 = vmatprep.subr.mxu0 0.0
    %150 = vmatpush1.msra.mxu0 0.0
    %151 = vmatprep.subr.mxu0 0.0
    %152 = vmatpush1.msra.mxu0 0.0
    %153 = vmatprep.subr.mxu0 0.0
    %154 = vmatpush1.msra.mxu0 0.0
    %155 = vmatprep.subr.mxu0 0.0
    %156 = vmatpush1.msra.mxu0 0.0
    %157 = vmatprep.subr.mxu0 0.0
    %158 = vmatpush1.msra.mxu0 0.0
    %159 = vmatprep.subr.mxu0 0.0
    %160 = vmatpush1.msra.mxu0 0.0
    %161 = vmatprep.subr.mxu0 0.0
    %162 = vmatpush1.msra.mxu0 0.0
    %163 = vmatprep.subr.mxu0 0.0
    %164 = vmatpush1.msra.mxu0 0.0
    %165 = vmatprep.subr.mxu0 0.0
    %166 = vmatpush1.msra.mxu0 0.0
    %167 = vmatprep.subr.mxu0 0.0
    %168 = vmatpush1.msra.mxu0 0.0
    %169 = vmatprep.subr.mxu0 0.0
    %170 = vmatpush1.msra.mxu0 0.0
    %171 = vmatprep.subr.mxu0 0.0
    %172 = vmatpush1.msra.mxu0 0.0
    %173 = vmatprep.subr.mxu0 0.0
    %174 = vmatpush1.msra.mxu0 0.0
    %175 = vmatprep.subr.mxu0 0.0
    %176 = vmatpush1.msra.mxu0 0.0
    %177 = vmatprep.subr.mxu0 0.0
    %178 = vmatpush1.msra.mxu0 0.0
    %179 = vmatprep.subr.mxu0 0.0
    %180 = vmatpush1.msra.mxu0 0.0
    %181 = vmatprep.subr.mxu0 0.0
    %182 = vmatpush1.msra.mxu0 0.0
    %183 = vmatprep.subr.mxu0 0.0
    %184 = vmatpush1.msra.mxu0 0.0
    %185 = vmatprep.subr.mxu0 0.0
    %186 = vmatpush1.msra.mxu0 0.0
    %187 = vmatprep.subr.mxu0 0.0
    %188 = vmatpush1.msra.mxu0 0.0
    %189 = vmatprep.mubr.f32.mxu0 0.0
    %190 = vmatmul.mubr.f32.gmra.mrb[0].mxu0 %v123
    %v191 = vpop.f32.mrb[0].mxu0
    %v192 = vadd.f32 0.0, %v191
    %v193 = vpop.f32.mrb[0].mxu0
    %194 = vdwg.mxu0
    %v195 = vadd.f32 %v113, %v192
    %v196 = vmul.f32 %v195, 0.5
    %v197 = vtanh.pop %v196
    %v198 = vmul.f32 %v197, 0.5
    %v199 = vadd.f32 %v198, 0.5
    %v200 = vtanh.pop %v195
    %v201 = vmul.f32 %v199, 0.0
    %203 = vrot.lane.b32.xlu0 %v200, 64
    %v204 = vpop.permute.xlu0 %203
    %v206 = vmul.f32 %v199, %v204
    %208 = vrot.lane.b32.xlu0 %v206, 32
    %v209 = vpop.permute.xlu0 %208
    %v211 = vadd.f32 %v201, %v209
    %v212 = vtanh.pop %v211
    %214 = vrot.lane.b32.xlu0 %v212, 64
    %v215 = vpop.permute.xlu0 %214
    %v217 = vmul.f32 %v199, %v215
    %219 = vrot.lane.b32.xlu0 %v217, 32
    %v220 = vpop.permute.xlu0 %219
    %v221 = vsel %vm121, %v220, 0
    %223 = vmatprep.subr.mxu0 0.0
    %224 = vmatpush1.msra.mxu0 %v28
    %225 = vmatprep.subr.mxu0 0.0
    %226 = vmatpush1.msra.mxu0 %v29
    %227 = vmatprep.subr.mxu0 0.0
    %228 = vmatpush1.msra.mxu0 %v30
    %229 = vmatprep.subr.mxu0 0.0
    %230 = vmatpush1.msra.mxu0 %v31
    %231 = vmatprep.subr.mxu0 0.0
    %232 = vmatpush1.msra.mxu0 0.0
    %233 = vmatprep.subr.mxu0 0.0
    %234 = vmatpush1.msra.mxu0 0.0
    %235 = vmatprep.subr.mxu0 0.0
    %236 = vmatpush1.msra.mxu0 0.0
    %237 = vmatprep.subr.mxu0 0.0
    %238 = vmatpush1.msra.mxu0 0.0
    %239 = vmatprep.subr.mxu0 0.0
    %240 = vmatpush1.msra.mxu0 0.0
    %241 = vmatprep.subr.mxu0 0.0
    %242 = vmatpush1.msra.mxu0 0.0
    %243 = vmatprep.subr.mxu0 0.0
    %244 = vmatpush1.msra.mxu0 0.0
    %245 = vmatprep.subr.mxu0 0.0
    %246 = vmatpush1.msra.mxu0 0.0
    %247 = vmatprep.subr.mxu0 0.0
    %248 = vmatpush1.msra.mxu0 0.0
    %249 = vmatprep.subr.mxu0 0.0
    %250 = vmatpush1.msra.mxu0 0.0
    %251 = vmatprep.subr.mxu0 0.0
    %252 = vmatpush1.msra.mxu0 0.0
    %253 = vmatprep.subr.mxu0 0.0
    %254 = vmatpush1.msra.mxu0 0.0
    %255 = vmatprep.subr.mxu0 0.0
    %256 = vmatpush1.msra.mxu0 0.0
    %257 = vmatprep.subr.mxu0 0.0
    %258 = vmatpush1.msra.mxu0 0.0
    %259 = vmatprep.subr.mxu0 0.0
    %260 = vmatpush1.msra.mxu0 0.0
    %261 = vmatprep.subr.mxu0 0.0
    %262 = vmatpush1.msra.mxu0 0.0
    %263 = vmatprep.subr.mxu0 0.0
    %264 = vmatpush1.msra.mxu0 0.0
    %265 = vmatprep.subr.mxu0 0.0
    %266 = vmatpush1.msra.mxu0 0.0
    %267 = vmatprep.subr.mxu0 0.0
    %268 = vmatpush1.msra.mxu0 0.0
    %269 = vmatprep.subr.mxu0 0.0
    %270 = vmatpush1.msra.mxu0 0.0
    %271 = vmatprep.subr.mxu0 0.0
    %272 = vmatpush1.msra.mxu0 0.0
    %273 = vmatprep.subr.mxu0 0.0
    %274 = vmatpush1.msra.mxu0 0.0
    %275 = vmatprep.subr.mxu0 0.0
    %276 = vmatpush1.msra.mxu0 0.0
    %277 = vmatprep.subr.mxu0 0.0
    %278 = vmatpush1.msra.mxu0 0.0
    %279 = vmatprep.subr.mxu0 0.0
    %280 = vmatpush1.msra.mxu0 0.0
    %281 = vmatprep.subr.mxu0 0.0
    %282 = vmatpush1.msra.mxu0 0.0
    %283 = vmatprep.subr.mxu0 0.0
    %284 = vmatpush1.msra.mxu0 0.0
    %285 = vmatprep.subr.mxu0 0.0
    %286 = vmatpush1.msra.mxu0 0.0
    %287 = vmatprep.mubr.f32.mxu0 0.0
    %288 = vmatmul.mubr.f32.gmra.mrb[0].mxu0 %v221
    %v289 = vpop.f32.mrb[0].mxu0
    %v290 = vadd.f32 0.0, %v289
    %v291 = vpop.f32.mrb[0].mxu0
    %292 = vdwg.mxu0
    %v294 = vrot.slane %v290, 6
    %v296 = vadd.f32 %v113, %v294
    %v297 = vmul.f32 %v296, 0.5
    %v298 = vtanh.pop %v297
    %v299 = vmul.f32 %v298, 0.5
    %v300 = vadd.f32 %v299, 0.5
    %v301 = vtanh.pop %v296
    %v303 = vrot.slane %v211, 6
    %v305 = vmul.f32 %v300, %v303
    %307 = vrot.lane.b32.xlu0 %v301, 64
    %v308 = vpop.permute.xlu0 %307
    %v310 = vmul.f32 %v300, %v308
    %312 = vrot.lane.b32.xlu0 %v310, 32
    %v313 = vpop.permute.xlu0 %312
    %v315 = vadd.f32 %v305, %v313
    %v316 = vtanh.pop %v315
    %318 = vrot.lane.b32.xlu0 %v316, 64
    %v319 = vpop.permute.xlu0 %318
    %v321 = vmul.f32 %v300, %v319
    %v323 = vrot.slane %v321, 2
    %324 = vrot.lane.b32.xlu0 %v323, 32
    %v325 = vpop.permute.xlu0 %324
    %v326 = vsel %vm121, %v325, 0
    %328 = vmatprep.subr.mxu0 0.0
    %329 = vmatpush1.msra.mxu0 %v28
    %330 = vmatprep.subr.mxu0 0.0
    %331 = vmatpush1.msra.mxu0 %v29
    %332 = vmatprep.subr.mxu0 0.0
    %333 = vmatpush1.msra.mxu0 %v30
    %334 = vmatprep.subr.mxu0 0.0
    %335 = vmatpush1.msra.mxu0 %v31
    %336 = vmatprep.subr.mxu0 0.0
    %337 = vmatpush1.msra.mxu0 0.0
    %338 = vmatprep.subr.mxu0 0.0
    %339 = vmatpush1.msra.mxu0 0.0
    %340 = vmatprep.subr.mxu0 0.0
    %341 = vmatpush1.msra.mxu0 0.0
    %342 = vmatprep.subr.mxu0 0.0
    %343 = vmatpush1.msra.mxu0 0.0
    %344 = vmatprep.subr.mxu0 0.0
    %345 = vmatpush1.msra.mxu0 0.0
    %346 = vmatprep.subr.mxu0 0.0
    %347 = vmatpush1.msra.mxu0 0.0
    %348 = vmatprep.subr.mxu0 0.0
    %349 = vmatpush1.msra.mxu0 0.0
    %350 = vmatprep.subr.mxu0 0.0
    %351 = vmatpush1.msra.mxu0 0.0
    %352 = vmatprep.subr.mxu0 0.0
    %353 = vmatpush1.msra.mxu0 0.0
    %354 = vmatprep.subr.mxu0 0.0
    %355 = vmatpush1.msra.mxu0 0.0
    %356 = vmatprep.subr.mxu0 0.0
    %357 = vmatpush1.msra.mxu0 0.0
    %358 = vmatprep.subr.mxu0 0.0
    %359 = vmatpush1.msra.mxu0 0.0
    %360 = vmatprep.subr.mxu0 0.0
    %361 = vmatpush1.msra.mxu0 0.0
    %362 = vmatprep.subr.mxu0 0.0
    %363 = vmatpush1.msra.mxu0 0.0
    %364 = vmatprep.subr.mxu0 0.0
    %365 = vmatpush1.msra.mxu0 0.0
    %366 = vmatprep.subr.mxu0 0.0
    %367 = vmatpush1.msra.mxu0 0.0
    %368 = vmatprep.subr.mxu0 0.0
    %369 = vmatpush1.msra.mxu0 0.0
    %370 = vmatprep.subr.mxu0 0.0
    %371 = vmatpush1.msra.mxu0 0.0
    %372 = vmatprep.subr.mxu0 0.0
    %373 = vmatpush1.msra.mxu0 0.0
    %374 = vmatprep.subr.mxu0 0.0
    %375 = vmatpush1.msra.mxu0 0.0
    %376 = vmatprep.subr.mxu0 0.0
    %377 = vmatpush1.msra.mxu0 0.0
    %378 = vmatprep.subr.mxu0 0.0
    %379 = vmatpush1.msra.mxu0 0.0
    %380 = vmatprep.subr.mxu0 0.0
    %381 = vmatpush1.msra.mxu0 0.0
    %382 = vmatprep.subr.mxu0 0.0
    %383 = vmatpush1.msra.mxu0 0.0
    %384 = vmatprep.subr.mxu0 0.0
    %385 = vmatpush1.msra.mxu0 0.0
    %386 = vmatprep.subr.mxu0 0.0
    %387 = vmatpush1.msra.mxu0 0.0
    %388 = vmatprep.subr.mxu0 0.0
    %389 = vmatpush1.msra.mxu0 0.0
    %390 = vmatprep.subr.mxu0 0.0
    %391 = vmatpush1.msra.mxu0 0.0
    %392 = vmatprep.mubr.f32.mxu0 0.0
    %393 = vmatmul.mubr.f32.gmra.mrb[0].mxu0 %v326
    %v394 = vpop.f32.mrb[0].mxu0
    %v395 = vadd.f32 0.0, %v394
    %v396 = vpop.f32.mrb[0].mxu0
    %397 = vdwg.mxu0
    %v399 = vrot.slane %v395, 4
    %v401 = vadd.f32 %v113, %v399
    %v402 = vmul.f32 %v401, 0.5
    %v403 = vtanh.pop %v402
    %v404 = vmul.f32 %v403, 0.5
    %v405 = vadd.f32 %v404, 0.5
    %v406 = vtanh.pop %v401
    %v408 = vrot.slane %v315, 6
    %v410 = vmul.f32 %v405, %v408
    %412 = vrot.lane.b32.xlu0 %v406, 64
    %v413 = vpop.permute.xlu0 %412
    %v415 = vmul.f32 %v405, %v413
    %417 = vrot.lane.b32.xlu0 %v415, 32
    %v418 = vpop.permute.xlu0 %417
    %v420 = vadd.f32 %v410, %v418
    %v421 = vtanh.pop %v420
    %423 = vrot.lane.b32.xlu0 %v421, 64
    %v424 = vpop.permute.xlu0 %423
    %v426 = vmul.f32 %v405, %v424
    %v428 = vrot.slane %v426, 4
    %429 = vrot.lane.b32.xlu0 %v428, 32
    %v430 = vpop.permute.xlu0 %429
    %v431 = vsel %vm121, %v430, 0
    %433 = vmatprep.subr.mxu0 0.0
    %434 = vmatpush1.msra.mxu0 %v28
    %435 = vmatprep.subr.mxu0 0.0
    %436 = vmatpush1.msra.mxu0 %v29
    %437 = vmatprep.subr.mxu0 0.0
    %438 = vmatpush1.msra.mxu0 %v30
    %439 = vmatprep.subr.mxu0 0.0
    %440 = vmatpush1.msra.mxu0 %v31
    %441 = vmatprep.subr.mxu0 0.0
    %442 = vmatpush1.msra.mxu0 0.0
    %443 = vmatprep.subr.mxu0 0.0
    %444 = vmatpush1.msra.mxu0 0.0
    %445 = vmatprep.subr.mxu0 0.0
    %446 = vmatpush1.msra.mxu0 0.0
    %447 = vmatprep.subr.mxu0 0.0
    %448 = vmatpush1.msra.mxu0 0.0
    %449 = vmatprep.subr.mxu0 0.0
    %450 = vmatpush1.msra.mxu0 0.0
    %451 = vmatprep.subr.mxu0 0.0
    %452 = vmatpush1.msra.mxu0 0.0
    %453 = vmatprep.subr.mxu0 0.0
    %454 = vmatpush1.msra.mxu0 0.0
    %455 = vmatprep.subr.mxu0 0.0
    %456 = vmatpush1.msra.mxu0 0.0
    %457 = vmatprep.subr.mxu0 0.0
    %458 = vmatpush1.msra.mxu0 0.0
    %459 = vmatprep.subr.mxu0 0.0
    %460 = vmatpush1.msra.mxu0 0.0
    %461 = vmatprep.subr.mxu0 0.0
    %462 = vmatpush1.msra.mxu0 0.0
    %463 = vmatprep.subr.mxu0 0.0
    %464 = vmatpush1.msra.mxu0 0.0
    %465 = vmatprep.subr.mxu0 0.0
    %466 = vmatpush1.msra.mxu0 0.0
    %467 = vmatprep.subr.mxu0 0.0
    %468 = vmatpush1.msra.mxu0 0.0
    %469 = vmatprep.subr.mxu0 0.0
    %470 = vmatpush1.msra.mxu0 0.0
    %471 = vmatprep.subr.mxu0 0.0
    %472 = vmatpush1.msra.mxu0 0.0
    %473 = vmatprep.subr.mxu0 0.0
    %474 = vmatpush1.msra.mxu0 0.0
    %475 = vmatprep.subr.mxu0 0.0
    %476 = vmatpush1.msra.mxu0 0.0
    %477 = vmatprep.subr.mxu0 0.0
    %478 = vmatpush1.msra.mxu0 0.0
    %479 = vmatprep.subr.mxu0 0.0
    %480 = vmatpush1.msra.mxu0 0.0
    %481 = vmatprep.subr.mxu0 0.0
    %482 = vmatpush1.msra.mxu0 0.0
    %483 = vmatprep.subr.mxu0 0.0
    %484 = vmatpush1.msra.mxu0 0.0
    %485 = vmatprep.subr.mxu0 0.0
    %486 = vmatpush1.msra.mxu0 0.0
    %487 = vmatprep.subr.mxu0 0.0
    %488 = vmatpush1.msra.mxu0 0.0
    %489 = vmatprep.subr.mxu0 0.0
    %490 = vmatpush1.msra.mxu0 0.0
    %491 = vmatprep.subr.mxu0 0.0
    %492 = vmatpush1.msra.mxu0 0.0
    %493 = vmatprep.subr.mxu0 0.0
    %494 = vmatpush1.msra.mxu0 0.0
    %495 = vmatprep.subr.mxu0 0.0
    %496 = vmatpush1.msra.mxu0 0.0
    %497 = vmatprep.mubr.f32.mxu0 0.0
    %498 = vmatmul.mubr.f32.gmra.mrb[0].mxu0 %v431
    %v499 = vpop.f32.mrb[0].mxu0
    %v500 = vadd.f32 0.0, %v499
    %v501 = vpop.f32.mrb[0].mxu0
    %502 = vdwg.mxu0
    %v504 = vrot.slane %v500, 2
    %v506 = vadd.f32 %v113, %v504
    %v507 = vmul.f32 %v506, 0.5
    %v508 = vtanh.pop %v507
    %v509 = vmul.f32 %v508, 0.5
    %v510 = vadd.f32 %v509, 0.5
    %v511 = vtanh.pop %v506
    %v513 = vrot.slane %v420, 6
    %v515 = vmul.f32 %v510, %v513
    %517 = vrot.lane.b32.xlu0 %v511, 64
    %v518 = vpop.permute.xlu0 %517
    %v520 = vmul.f32 %v510, %v518
    %522 = vrot.lane.b32.xlu0 %v520, 32
    %v523 = vpop.permute.xlu0 %522
    %v525 = vadd.f32 %v515, %v523
    %v526 = vtanh.pop %v525
    %528 = vrot.lane.b32.xlu0 %v526, 64
    %v529 = vpop.permute.xlu0 %528
    %v531 = vmul.f32 %v510, %v529
    %v533 = vrot.slane %v531, 6
    %534 = vrot.lane.b32.xlu0 %v533, 32
    %v535 = vpop.permute.xlu0 %534
    %v536 = vsel %vm121, %v535, 0
    %538 = vmatprep.subr.mxu0 0.0
    %539 = vmatpush1.msra.mxu0 %v28
    %540 = vmatprep.subr.mxu0 0.0
    %541 = vmatpush1.msra.mxu0 %v29
    %542 = vmatprep.subr.mxu0 0.0
    %543 = vmatpush1.msra.mxu0 %v30
    %544 = vmatprep.subr.mxu0 0.0
    %545 = vmatpush1.msra.mxu0 %v31
    %546 = vmatprep.subr.mxu0 0.0
    %547 = vmatpush1.msra.mxu0 0.0
    %548 = vmatprep.subr.mxu0 0.0
    %549 = vmatpush1.msra.mxu0 0.0
    %550 = vmatprep.subr.mxu0 0.0
    %551 = vmatpush1.msra.mxu0 0.0
    %552 = vmatprep.subr.mxu0 0.0
    %553 = vmatpush1.msra.mxu0 0.0
    %554 = vmatprep.subr.mxu0 0.0
    %555 = vmatpush1.msra.mxu0 0.0
    %556 = vmatprep.subr.mxu0 0.0
    %557 = vmatpush1.msra.mxu0 0.0
    %558 = vmatprep.subr.mxu0 0.0
    %559 = vmatpush1.msra.mxu0 0.0
    %560 = vmatprep.subr.mxu0 0.0
    %561 = vmatpush1.msra.mxu0 0.0
    %562 = vmatprep.subr.mxu0 0.0
    %563 = vmatpush1.msra.mxu0 0.0
    %564 = vmatprep.subr.mxu0 0.0
    %565 = vmatpush1.msra.mxu0 0.0
    %566 = vmatprep.subr.mxu0 0.0
    %567 = vmatpush1.msra.mxu0 0.0
    %568 = vmatprep.subr.mxu0 0.0
    %569 = vmatpush1.msra.mxu0 0.0
    %570 = vmatprep.subr.mxu0 0.0
    %571 = vmatpush1.msra.mxu0 0.0
    %572 = vmatprep.subr.mxu0 0.0
    %573 = vmatpush1.msra.mxu0 0.0
    %574 = vmatprep.subr.mxu0 0.0
    %575 = vmatpush1.msra.mxu0 0.0
    %576 = vmatprep.subr.mxu0 0.0
    %577 = vmatpush1.msra.mxu0 0.0
    %578 = vmatprep.subr.mxu0 0.0
    %579 = vmatpush1.msra.mxu0 0.0
    %580 = vmatprep.subr.mxu0 0.0
    %581 = vmatpush1.msra.mxu0 0.0
    %582 = vmatprep.subr.mxu0 0.0
    %583 = vmatpush1.msra.mxu0 0.0
    %584 = vmatprep.subr.mxu0 0.0
    %585 = vmatpush1.msra.mxu0 0.0
    %586 = vmatprep.subr.mxu0 0.0
    %587 = vmatpush1.msra.mxu0 0.0
    %588 = vmatprep.subr.mxu0 0.0
    %589 = vmatpush1.msra.mxu0 0.0
    %590 = vmatprep.subr.mxu0 0.0
    %591 = vmatpush1.msra.mxu0 0.0
    %592 = vmatprep.subr.mxu0 0.0
    %593 = vmatpush1.msra.mxu0 0.0
    %594 = vmatprep.subr.mxu0 0.0
    %595 = vmatpush1.msra.mxu0 0.0
    %596 = vmatprep.subr.mxu0 0.0
    %597 = vmatpush1.msra.mxu0 0.0
    %598 = vmatprep.subr.mxu0 0.0
    %599 = vmatpush1.msra.mxu0 0.0
    %600 = vmatprep.subr.mxu0 0.0
    %601 = vmatpush1.msra.mxu0 0.0
    %602 = vmatprep.mubr.f32.mxu0 0.0
    %603 = vmatmul.mubr.f32.gmra.mrb[0].mxu0 %v536
    %v604 = vpop.f32.mrb[0].mxu0
    %v605 = vadd.f32 0.0, %v604
    %v606 = vpop.f32.mrb[0].mxu0
    %607 = vdwg.mxu0
    %v608 = vadd.f32 %v118, %v605
    %v609 = vmul.f32 %v608, 0.5
    %v610 = vtanh.pop %v609
    %v611 = vmul.f32 %v610, 0.5
    %v612 = vadd.f32 %v611, 0.5
    %v613 = vtanh.pop %v608
    %v615 = vrot.slane %v525, 6
    %v617 = vmul.f32 %v612, %v615
    %619 = vrot.lane.b32.xlu0 %v613, 64
    %v620 = vpop.permute.xlu0 %619
    %v622 = vmul.f32 %v612, %v620
    %624 = vrot.lane.b32.xlu0 %v622, 32
    %v625 = vpop.permute.xlu0 %624
    %v627 = vadd.f32 %v617, %v625
    %v628 = vtanh.pop %v627
    %630 = vrot.lane.b32.xlu0 %v628, 64
    %v631 = vpop.permute.xlu0 %630
    %v633 = vmul.f32 %v612, %v631
    %635 = vrot.lane.b32.xlu0 %v633, 32
    %v636 = vpop.permute.xlu0 %635
    %v637 = vsel %vm121, %v636, 0
    %639 = vmatprep.subr.mxu0 0.0
    %640 = vmatpush1.msra.mxu0 %v28
    %641 = vmatprep.subr.mxu0 0.0
    %642 = vmatpush1.msra.mxu0 %v29
    %643 = vmatprep.subr.mxu0 0.0
    %644 = vmatpush1.msra.mxu0 %v30
    %645 = vmatprep.subr.mxu0 0.0
    %646 = vmatpush1.msra.mxu0 %v31
    %647 = vmatprep.subr.mxu0 0.0
    %648 = vmatpush1.msra.mxu0 0.0
    %649 = vmatprep.subr.mxu0 0.0
    %650 = vmatpush1.msra.mxu0 0.0
    %651 = vmatprep.subr.mxu0 0.0
    %652 = vmatpush1.msra.mxu0 0.0
    %653 = vmatprep.subr.mxu0 0.0
    %654 = vmatpush1.msra.mxu0 0.0
    %655 = vmatprep.subr.mxu0 0.0
    %656 = vmatpush1.msra.mxu0 0.0
    %657 = vmatprep.subr.mxu0 0.0
    %658 = vmatpush1.msra.mxu0 0.0
    %659 = vmatprep.subr.mxu0 0.0
    %660 = vmatpush1.msra.mxu0 0.0
    %661 = vmatprep.subr.mxu0 0.0
    %662 = vmatpush1.msra.mxu0 0.0
    %663 = vmatprep.subr.mxu0 0.0
    %664 = vmatpush1.msra.mxu0 0.0
    %665 = vmatprep.subr.mxu0 0.0
    %666 = vmatpush1.msra.mxu0 0.0
    %667 = vmatprep.subr.mxu0 0.0
    %668 = vmatpush1.msra.mxu0 0.0
    %669 = vmatprep.subr.mxu0 0.0
    %670 = vmatpush1.msra.mxu0 0.0
    %671 = vmatprep.subr.mxu0 0.0
    %672 = vmatpush1.msra.mxu0 0.0
    %673 = vmatprep.subr.mxu0 0.0
    %674 = vmatpush1.msra.mxu0 0.0
    %675 = vmatprep.subr.mxu0 0.0
    %676 = vmatpush1.msra.mxu0 0.0
    %677 = vmatprep.subr.mxu0 0.0
    %678 = vmatpush1.msra.mxu0 0.0
    %679 = vmatprep.subr.mxu0 0.0
    %680 = vmatpush1.msra.mxu0 0.0
    %681 = vmatprep.subr.mxu0 0.0
    %682 = vmatpush1.msra.mxu0 0.0
    %683 = vmatprep.subr.mxu0 0.0
    %684 = vmatpush1.msra.mxu0 0.0
    %685 = vmatprep.subr.mxu0 0.0
    %686 = vmatpush1.msra.mxu0 0.0
    %687 = vmatprep.subr.mxu0 0.0
    %688 = vmatpush1.msra.mxu0 0.0
    %689 = vmatprep.subr.mxu0 0.0
    %690 = vmatpush1.msra.mxu0 0.0
    %691 = vmatprep.subr.mxu0 0.0
    %692 = vmatpush1.msra.mxu0 0.0
    %693 = vmatprep.subr.mxu0 0.0
    %694 = vmatpush1.msra.mxu0 0.0
    %695 = vmatprep.subr.mxu0 0.0
    %696 = vmatpush1.msra.mxu0 0.0
    %697 = vmatprep.subr.mxu0 0.0
    %698 = vmatpush1.msra.mxu0 0.0
    %699 = vmatprep.subr.mxu0 0.0
    %700 = vmatpush1.msra.mxu0 0.0
    %701 = vmatprep.subr.mxu0 0.0
    %702 = vmatpush1.msra.mxu0 0.0
    %703 = vmatprep.mubr.f32.mxu0 0.0
    %704 = vmatmul.mubr.f32.gmra.mrb[0].mxu0 %v637
    %v705 = vpop.f32.mrb[0].mxu0
    %v706 = vadd.f32 0.0, %v705
    %v707 = vpop.f32.mrb[0].mxu0
    %708 = vdwg.mxu0
    %v710 = vrot.slane %v706, 6
    %v712 = vadd.f32 %v118, %v710
    %v713 = vmul.f32 %v712, 0.5
    %v714 = vtanh.pop %v713
    %v715 = vmul.f32 %v714, 0.5
    %v716 = vadd.f32 %v715, 0.5
    %v717 = vtanh.pop %v712
    %v719 = vrot.slane %v627, 6
    %v721 = vmul.f32 %v716, %v719
    %723 = vrot.lane.b32.xlu0 %v717, 64
    %v724 = vpop.permute.xlu0 %723
    %v726 = vmul.f32 %v716, %v724
    %728 = vrot.lane.b32.xlu0 %v726, 32
    %v729 = vpop.permute.xlu0 %728
    %v731 = vadd.f32 %v721, %v729
    %v732 = vtanh.pop %v731
    %734 = vrot.lane.b32.xlu0 %v732, 64
    %v735 = vpop.permute.xlu0 %734
    %v737 = vmul.f32 %v716, %v735
    %v739 = vrot.slane %v737, 2
    %740 = vrot.lane.b32.xlu0 %v739, 32
    %v741 = vpop.permute.xlu0 %740
    %v742 = vsel %vm121, %v741, 0
    %744 = vmatprep.subr.mxu0 0.0
    %745 = vmatpush1.msra.mxu0 %v28
    %746 = vmatprep.subr.mxu0 0.0
    %747 = vmatpush1.msra.mxu0 %v29
    %748 = vmatprep.subr.mxu0 0.0
    %749 = vmatpush1.msra.mxu0 %v30
    %750 = vmatprep.subr.mxu0 0.0
    %751 = vmatpush1.msra.mxu0 %v31
    %752 = vmatprep.subr.mxu0 0.0
    %753 = vmatpush1.msra.mxu0 0.0
    %754 = vmatprep.subr.mxu0 0.0
    %755 = vmatpush1.msra.mxu0 0.0
    %756 = vmatprep.subr.mxu0 0.0
    %757 = vmatpush1.msra.mxu0 0.0
    %758 = vmatprep.subr.mxu0 0.0
    %759 = vmatpush1.msra.mxu0 0.0
    %760 = vmatprep.subr.mxu0 0.0
    %761 = vmatpush1.msra.mxu0 0.0
    %762 = vmatprep.subr.mxu0 0.0
    %763 = vmatpush1.msra.mxu0 0.0
    %764 = vmatprep.subr.mxu0 0.0
    %765 = vmatpush1.msra.mxu0 0.0
    %766 = vmatprep.subr.mxu0 0.0
    %767 = vmatpush1.msra.mxu0 0.0
    %768 = vmatprep.subr.mxu0 0.0
    %769 = vmatpush1.msra.mxu0 0.0
    %770 = vmatprep.subr.mxu0 0.0
    %771 = vmatpush1.msra.mxu0 0.0
    %772 = vmatprep.subr.mxu0 0.0
    %773 = vmatpush1.msra.mxu0 0.0
    %774 = vmatprep.subr.mxu0 0.0
    %775 = vmatpush1.msra.mxu0 0.0
    %776 = vmatprep.subr.mxu0 0.0
    %777 = vmatpush1.msra.mxu0 0.0
    %778 = vmatprep.subr.mxu0 0.0
    %779 = vmatpush1.msra.mxu0 0.0
    %780 = vmatprep.subr.mxu0 0.0
    %781 = vmatpush1.msra.mxu0 0.0
    %782 = vmatprep.subr.mxu0 0.0
    %783 = vmatpush1.msra.mxu0 0.0
    %784 = vmatprep.subr.mxu0 0.0
    %785 = vmatpush1.msra.mxu0 0.0
    %786 = vmatprep.subr.mxu0 0.0
    %787 = vmatpush1.msra.mxu0 0.0
    %788 = vmatprep.subr.mxu0 0.0
    %789 = vmatpush1.msra.mxu0 0.0
    %790 = vmatprep.subr.mxu0 0.0
    %791 = vmatpush1.msra.mxu0 0.0
    %792 = vmatprep.subr.mxu0 0.0
    %793 = vmatpush1.msra.mxu0 0.0
    %794 = vmatprep.subr.mxu0 0.0
    %795 = vmatpush1.msra.mxu0 0.0
    %796 = vmatprep.subr.mxu0 0.0
    %797 = vmatpush1.msra.mxu0 0.0
    %798 = vmatprep.subr.mxu0 0.0
    %799 = vmatpush1.msra.mxu0 0.0
    %800 = vmatprep.subr.mxu0 0.0
    %801 = vmatpush1.msra.mxu0 0.0
    %802 = vmatprep.subr.mxu0 0.0
    %803 = vmatpush1.msra.mxu0 0.0
    %804 = vmatprep.subr.mxu0 0.0
    %805 = vmatpush1.msra.mxu0 0.0
    %806 = vmatprep.subr.mxu0 0.0
    %807 = vmatpush1.msra.mxu0 0.0
    %808 = vmatprep.mubr.f32.mxu0 0.0
    %809 = vmatmul.mubr.f32.gmra.mrb[0].mxu0 %v742
    %v810 = vpop.f32.mrb[0].mxu0
    %v811 = vadd.f32 0.0, %v810
    %v812 = vpop.f32.mrb[0].mxu0
    %813 = vdwg.mxu0
    %v815 = vrot.slane %v811, 4
    %v817 = vadd.f32 %v118, %v815
    %v818 = vmul.f32 %v817, 0.5
    %v819 = vtanh.pop %v818
    %v820 = vmul.f32 %v819, 0.5
    %v821 = vadd.f32 %v820, 0.5
    %v822 = vtanh.pop %v817
    %v824 = vrot.slane %v731, 6
    %v826 = vmul.f32 %v821, %v824
    %828 = vrot.lane.b32.xlu0 %v822, 64
    %v829 = vpop.permute.xlu0 %828
    %v831 = vmul.f32 %v821, %v829
    %833 = vrot.lane.b32.xlu0 %v831, 32
    %v834 = vpop.permute.xlu0 %833
    %v836 = vadd.f32 %v826, %v834
    %v837 = vtanh.pop %v836
    %839 = vrot.lane.b32.xlu0 %v837, 64
    %v840 = vpop.permute.xlu0 %839
    %v842 = vmul.f32 %v821, %v840
    %v844 = vrot.slane %v842, 4
    %845 = vrot.lane.b32.xlu0 %v844, 32
    %v846 = vpop.permute.xlu0 %845
    %v847 = vsel %vm121, %v846, 0
    %849 = vmatprep.subr.mxu0 0.0
    %850 = vmatpush1.msra.mxu0 %v28
    %851 = vmatprep.subr.mxu0 0.0
    %852 = vmatpush1.msra.mxu0 %v29
    %853 = vmatprep.subr.mxu0 0.0
    %854 = vmatpush1.msra.mxu0 %v30
    %855 = vmatprep.subr.mxu0 0.0
    %856 = vmatpush1.msra.mxu0 %v31
    %857 = vmatprep.subr.mxu0 0.0
    %858 = vmatpush1.msra.mxu0 0.0
    %859 = vmatprep.subr.mxu0 0.0
    %860 = vmatpush1.msra.mxu0 0.0
    %861 = vmatprep.subr.mxu0 0.0
    %862 = vmatpush1.msra.mxu0 0.0
    %863 = vmatprep.subr.mxu0 0.0
    %864 = vmatpush1.msra.mxu0 0.0
    %865 = vmatprep.subr.mxu0 0.0
    %866 = vmatpush1.msra.mxu0 0.0
    %867 = vmatprep.subr.mxu0 0.0
    %868 = vmatpush1.msra.mxu0 0.0
    %869 = vmatprep.subr.mxu0 0.0
    %870 = vmatpush1.msra.mxu0 0.0
    %871 = vmatprep.subr.mxu0 0.0
    %872 = vmatpush1.msra.mxu0 0.0
    %873 = vmatprep.subr.mxu0 0.0
    %874 = vmatpush1.msra.mxu0 0.0
    %875 = vmatprep.subr.mxu0 0.0
    %876 = vmatpush1.msra.mxu0 0.0
    %877 = vmatprep.subr.mxu0 0.0
    %878 = vmatpush1.msra.mxu0 0.0
    %879 = vmatprep.subr.mxu0 0.0
    %880 = vmatpush1.msra.mxu0 0.0
    %881 = vmatprep.subr.mxu0 0.0
    %882 = vmatpush1.msra.mxu0 0.0
    %883 = vmatprep.subr.mxu0 0.0
    %884 = vmatpush1.msra.mxu0 0.0
    %885 = vmatprep.subr.mxu0 0.0
    %886 = vmatpush1.msra.mxu0 0.0
    %887 = vmatprep.subr.mxu0 0.0
    %888 = vmatpush1.msra.mxu0 0.0
    %889 = vmatprep.subr.mxu0 0.0
    %890 = vmatpush1.msra.mxu0 0.0
    %891 = vmatprep.subr.mxu0 0.0
    %892 = vmatpush1.msra.mxu0 0.0
    %893 = vmatprep.subr.mxu0 0.0
    %894 = vmatpush1.msra.mxu0 0.0
    %895 = vmatprep.subr.mxu0 0.0
    %896 = vmatpush1.msra.mxu0 0.0
    %897 = vmatprep.subr.mxu0 0.0
    %898 = vmatpush1.msra.mxu0 0.0
    %899 = vmatprep.subr.mxu0 0.0
    %900 = vmatpush1.msra.mxu0 0.0
    %901 = vmatprep.subr.mxu0 0.0
    %902 = vmatpush1.msra.mxu0 0.0
    %903 = vmatprep.subr.mxu0 0.0
    %904 = vmatpush1.msra.mxu0 0.0
    %905 = vmatprep.subr.mxu0 0.0
    %906 = vmatpush1.msra.mxu0 0.0
    %907 = vmatprep.subr.mxu0 0.0
    %908 = vmatpush1.msra.mxu0 0.0
    %909 = vmatprep.subr.mxu0 0.0
    %910 = vmatpush1.msra.mxu0 0.0
    %911 = vmatprep.subr.mxu0 0.0
    %912 = vmatpush1.msra.mxu0 0.0
    %913 = vmatprep.mubr.f32.mxu0 0.0
    %914 = vmatmul.mubr.f32.gmra.mrb[0].mxu0 %v847
    %v915 = vpop.f32.mrb[0].mxu0
    %v916 = vadd.f32 0.0, %v915
    %v917 = vpop.f32.mrb[0].mxu0
    %918 = vdwg.mxu0
    %v920 = vrot.slane %v916, 2
    %v922 = vadd.f32 %v118, %v920
    %v923 = vmul.f32 %v922, 0.5
    %v924 = vtanh.pop %v923
    %v925 = vmul.f32 %v924, 0.5
    %v926 = vadd.f32 %v925, 0.5
    %v927 = vtanh.pop %v922
    %v929 = vrot.slane %v836, 6
    %v931 = vmul.f32 %v926, %v929
    %933 = vrot.lane.b32.xlu0 %v927, 64
    %v934 = vpop.permute.xlu0 %933
    %v936 = vmul.f32 %v926, %v934
    %938 = vrot.lane.b32.xlu0 %v936, 32
    %v939 = vpop.permute.xlu0 %938
    %v941 = vadd.f32 %v931, %v939
    %v942 = vtanh.pop %v941
    %944 = vrot.lane.b32.xlu0 %v942, 64
    %v945 = vpop.permute.xlu0 %944
    %v947 = vmul.f32 %v926, %v945
    %v948 = vld [vmem:[#allocation2 + $0x38] sm:$0xff]
    %v949 = vld [vmem:[#allocation2 + $0x40] sm:$0xff]
    %v950 = vld [vmem:[#allocation2 + $0x48] sm:$0xff]
    %v951 = vld [vmem:[#allocation2 + $0x50] sm:$0xff]
    %v952 = vld [vmem:[#allocation2 + $0x58] sm:$0xff]
    %v953 = vld [vmem:[#allocation2 + $0x60] sm:$0xff]
    %v954 = vld [vmem:[#allocation2 + $0x68] sm:$0xff]
    %v955 = vld [vmem:[#allocation2 + $0x70] sm:$0xff]
    %v956 = vld [vmem:[#allocation2 + $0x78] sm:$0x1]
    %v957 = vlaneseq
    %v958 = vshrl.u32 %v957, 7
    %v959 = vsub.s32 0, %v958
    %v960 = vrot.slane %v956, %v959
    %961 = vmatprep.subr.mxu0 0.0
    %962 = vmatpush1.msra.mxu0 %v948
    %963 = vmatprep.subr.mxu0 0.0
    %964 = vmatpush1.msra.mxu0 %v949
    %965 = vmatprep.subr.mxu0 0.0
    %966 = vmatpush1.msra.mxu0 %v950
    %967 = vmatprep.subr.mxu0 0.0
    %968 = vmatpush1.msra.mxu0 %v951
    %969 = vmatprep.subr.mxu0 0.0
    %970 = vmatpush1.msra.mxu0 0.0
    %971 = vmatprep.subr.mxu0 0.0
    %972 = vmatpush1.msra.mxu0 0.0
    %973 = vmatprep.subr.mxu0 0.0
    %974 = vmatpush1.msra.mxu0 0.0
    %975 = vmatprep.subr.mxu0 0.0
    %976 = vmatpush1.msra.mxu0 0.0
    %977 = vmatprep.subr.mxu0 0.0
    %978 = vmatpush1.msra.mxu0 0.0
    %979 = vmatprep.subr.mxu0 0.0
    %980 = vmatpush1.msra.mxu0 0.0
    %981 = vmatprep.subr.mxu0 0.0
    %982 = vmatpush1.msra.mxu0 0.0
    %983 = vmatprep.subr.mxu0 0.0
    %984 = vmatpush1.msra.mxu0 0.0
    %985 = vmatprep.subr.mxu0 0.0
    %986 = vmatpush1.msra.mxu0 0.0
    %987 = vmatprep.subr.mxu0 0.0
    %988 = vmatpush1.msra.mxu0 0.0
    %989 = vmatprep.subr.mxu0 0.0
    %990 = vmatpush1.msra.mxu0 0.0
    %991 = vmatprep.subr.mxu0 0.0
    %992 = vmatpush1.msra.mxu0 0.0
    %993 = vmatprep.subr.mxu0 0.0
    %994 = vmatpush1.msra.mxu0 0.0
    %995 = vmatprep.subr.mxu0 0.0
    %996 = vmatpush1.msra.mxu0 0.0
    %997 = vmatprep.subr.mxu0 0.0
    %998 = vmatpush1.msra.mxu0 0.0
    %999 = vmatprep.subr.mxu0 0.0
    %1000 = vmatpush1.msra.mxu0 0.0
    %1001 = vmatprep.subr.mxu0 0.0
    %1002 = vmatpush1.msra.mxu0 0.0
    %1003 = vmatprep.subr.mxu0 0.0
    %1004 = vmatpush1.msra.mxu0 0.0
    %1005 = vmatprep.subr.mxu0 0.0
    %1006 = vmatpush1.msra.mxu0 0.0
    %1007 = vmatprep.subr.mxu0 0.0
    %1008 = vmatpush1.msra.mxu0 0.0
    %1009 = vmatprep.subr.mxu0 0.0
    %1010 = vmatpush1.msra.mxu0 0.0
    %1011 = vmatprep.subr.mxu0 0.0
    %1012 = vmatpush1.msra.mxu0 0.0
    %1013 = vmatprep.subr.mxu0 0.0
    %1014 = vmatpush1.msra.mxu0 0.0
    %1015 = vmatprep.subr.mxu0 0.0
    %1016 = vmatpush1.msra.mxu0 0.0
    %1017 = vmatprep.subr.mxu0 0.0
    %1018 = vmatpush1.msra.mxu0 0.0
    %1019 = vmatprep.subr.mxu0 0.0
    %1020 = vmatpush1.msra.mxu0 0.0
    %1021 = vmatprep.subr.mxu0 0.0
    %1022 = vmatpush1.msra.mxu0 0.0
    %1023 = vmatprep.subr.mxu0 0.0
    %1024 = vmatpush1.msra.mxu0 0.0
    %1025 = vmatprep.mubr.f32.mxu0 0.0
    %1026 = vmatmul.mubr.f32.gmra.mrb[0].mxu0 %v221
    %v1027 = vpop.f32.mrb[0].mxu0
    %v1028 = vadd.f32 %v960, %v1027
    %v1029 = vpop.f32.mrb[0].mxu0
    %1030 = vdwg.mxu0
    %1031 = vmatprep.subr.mxu0 0.0
    %1032 = vmatpush1.msra.mxu0 %v952
    %1033 = vmatprep.subr.mxu0 0.0
    %1034 = vmatpush1.msra.mxu0 %v953
    %1035 = vmatprep.subr.mxu0 0.0
    %1036 = vmatpush1.msra.mxu0 %v954
    %1037 = vmatprep.subr.mxu0 0.0
    %1038 = vmatpush1.msra.mxu0 %v955
    %1039 = vmatprep.subr.mxu0 0.0
    %1040 = vmatpush1.msra.mxu0 0.0
    %1041 = vmatprep.subr.mxu0 0.0
    %1042 = vmatpush1.msra.mxu0 0.0
    %1043 = vmatprep.subr.mxu0 0.0
    %1044 = vmatpush1.msra.mxu0 0.0
    %1045 = vmatprep.subr.mxu0 0.0
    %1046 = vmatpush1.msra.mxu0 0.0
    %1047 = vmatprep.subr.mxu0 0.0
    %1048 = vmatpush1.msra.mxu0 0.0
    %1049 = vmatprep.subr.mxu0 0.0
    %1050 = vmatpush1.msra.mxu0 0.0
    %1051 = vmatprep.subr.mxu0 0.0
    %1052 = vmatpush1.msra.mxu0 0.0
    %1053 = vmatprep.subr.mxu0 0.0
    %1054 = vmatpush1.msra.mxu0 0.0
    %1055 = vmatprep.subr.mxu0 0.0
    %1056 = vmatpush1.msra.mxu0 0.0
    %1057 = vmatprep.subr.mxu0 0.0
    %1058 = vmatpush1.msra.mxu0 0.0
    %1059 = vmatprep.subr.mxu0 0.0
    %1060 = vmatpush1.msra.mxu0 0.0
    %1061 = vmatprep.subr.mxu0 0.0
    %1062 = vmatpush1.msra.mxu0 0.0
    %1063 = vmatprep.subr.mxu0 0.0
    %1064 = vmatpush1.msra.mxu0 0.0
    %1065 = vmatprep.subr.mxu0 0.0
    %1066 = vmatpush1.msra.mxu0 0.0
    %1067 = vmatprep.subr.mxu0 0.0
    %1068 = vmatpush1.msra.mxu0 0.0
    %1069 = vmatprep.subr.mxu0 0.0
    %1070 = vmatpush1.msra.mxu0 0.0
    %1071 = vmatprep.subr.mxu0 0.0
    %1072 = vmatpush1.msra.mxu0 0.0
    %1073 = vmatprep.subr.mxu0 0.0
    %1074 = vmatpush1.msra.mxu0 0.0
    %1075 = vmatprep.subr.mxu0 0.0
    %1076 = vmatpush1.msra.mxu0 0.0
    %1077 = vmatprep.subr.mxu0 0.0
    %1078 = vmatpush1.msra.mxu0 0.0
    %1079 = vmatprep.subr.mxu0 0.0
    %1080 = vmatpush1.msra.mxu0 0.0
    %1081 = vmatprep.subr.mxu0 0.0
    %1082 = vmatpush1.msra.mxu0 0.0
    %1083 = vmatprep.subr.mxu0 0.0
    %1084 = vmatpush1.msra.mxu0 0.0
    %1085 = vmatprep.subr.mxu0 0.0
    %1086 = vmatpush1.msra.mxu0 0.0
    %1087 = vmatprep.subr.mxu0 0.0
    %1088 = vmatpush1.msra.mxu0 0.0
    %1089 = vmatprep.subr.mxu0 0.0
    %1090 = vmatpush1.msra.mxu0 0.0
    %1091 = vmatprep.subr.mxu0 0.0
    %1092 = vmatpush1.msra.mxu0 0.0
    %1093 = vmatprep.subr.mxu0 0.0
    %1094 = vmatpush1.msra.mxu0 0.0
    %1095 = vmatprep.mubr.f32.mxu0 0.0
    %1096 = vmatmul.mubr.f32.gmra.mrb[0].mxu0 %v123
    %v1097 = vpop.f32.mrb[0].mxu0
    %v1098 = vadd.f32 0.0, %v1097
    %v1099 = vpop.f32.mrb[0].mxu0
    %1100 = vdwg.mxu0
    %v1101 = vadd.f32 %v1028, %v1098
    %v1102 = vmul.f32 %v1101, 0.5
    %v1103 = vtanh.pop %v1102
    %v1104 = vmul.f32 %v1103, 0.5
    %v1105 = vadd.f32 %v1104, 0.5
    %v1106 = vtanh.pop %v1101
    %v1107 = vmul.f32 %v1105, 0.0
    %1109 = vrot.lane.b32.xlu0 %v1106, 64
    %v1110 = vpop.permute.xlu0 %1109
    %v1112 = vmul.f32 %v1105, %v1110
    %1114 = vrot.lane.b32.xlu0 %v1112, 32
    %v1115 = vpop.permute.xlu0 %1114
    %v1117 = vadd.f32 %v1107, %v1115
    %v1118 = vtanh.pop %v1117
    %1120 = vrot.lane.b32.xlu0 %v1118, 64
    %v1121 = vpop.permute.xlu0 %1120
    %v1123 = vmul.f32 %v1105, %v1121
    %1124 = vmatprep.subr.mxu0 0.0
    %1125 = vmatpush1.msra.mxu0 %v948
    %1126 = vmatprep.subr.mxu0 0.0
    %1127 = vmatpush1.msra.mxu0 %v949
    %1128 = vmatprep.subr.mxu0 0.0
    %1129 = vmatpush1.msra.mxu0 %v950
    %1130 = vmatprep.subr.mxu0 0.0
    %1131 = vmatpush1.msra.mxu0 %v951
    %1132 = vmatprep.subr.mxu0 0.0
    %1133 = vmatpush1.msra.mxu0 0.0
    %1134 = vmatprep.subr.mxu0 0.0
    %1135 = vmatpush1.msra.mxu0 0.0
    %1136 = vmatprep.subr.mxu0 0.0
    %1137 = vmatpush1.msra.mxu0 0.0
    %1138 = vmatprep.subr.mxu0 0.0
    %1139 = vmatpush1.msra.mxu0 0.0
    %1140 = vmatprep.subr.mxu0 0.0
    %1141 = vmatpush1.msra.mxu0 0.0
    %1142 = vmatprep.subr.mxu0 0.0
    %1143 = vmatpush1.msra.mxu0 0.0
    %1144 = vmatprep.subr.mxu0 0.0
    %1145 = vmatpush1.msra.mxu0 0.0
    %1146 = vmatprep.subr.mxu0 0.0
    %1147 = vmatpush1.msra.mxu0 0.0
    %1148 = vmatprep.subr.mxu0 0.0
    %1149 = vmatpush1.msra.mxu0 0.0
    %1150 = vmatprep.subr.mxu0 0.0
    %1151 = vmatpush1.msra.mxu0 0.0
    %1152 = vmatprep.subr.mxu0 0.0
    %1153 = vmatpush1.msra.mxu0 0.0
    %1154 = vmatprep.subr.mxu0 0.0
    %1155 = vmatpush1.msra.mxu0 0.0
    %1156 = vmatprep.subr.mxu0 0.0
    %1157 = vmatpush1.msra.mxu0 0.0
    %1158 = vmatprep.subr.mxu0 0.0
    %1159 = vmatpush1.msra.mxu0 0.0
    %1160 = vmatprep.subr.mxu0 0.0
    %1161 = vmatpush1.msra.mxu0 0.0
    %1162 = vmatprep.subr.mxu0 0.0
    %1163 = vmatpush1.msra.mxu0 0.0
    %1164 = vmatprep.subr.mxu0 0.0
    %1165 = vmatpush1.msra.mxu0 0.0
    %1166 = vmatprep.subr.mxu0 0.0
    %1167 = vmatpush1.msra.mxu0 0.0
    %1168 = vmatprep.subr.mxu0 0.0
    %1169 = vmatpush1.msra.mxu0 0.0
    %1170 = vmatprep.subr.mxu0 0.0
    %1171 = vmatpush1.msra.mxu0 0.0
    %1172 = vmatprep.subr.mxu0 0.0
    %1173 = vmatpush1.msra.mxu0 0.0
    %1174 = vmatprep.subr.mxu0 0.0
    %1175 = vmatpush1.msra.mxu0 0.0
    %1176 = vmatprep.subr.mxu0 0.0
    %1177 = vmatpush1.msra.mxu0 0.0
    %1178 = vmatprep.subr.mxu0 0.0
    %1179 = vmatpush1.msra.mxu0 0.0
    %1180 = vmatprep.subr.mxu0 0.0
    %1181 = vmatpush1.msra.mxu0 0.0
    %1182 = vmatprep.subr.mxu0 0.0
    %1183 = vmatpush1.msra.mxu0 0.0
    %1184 = vmatprep.subr.mxu0 0.0
    %1185 = vmatpush1.msra.mxu0 0.0
    %1186 = vmatprep.subr.mxu0 0.0
    %1187 = vmatpush1.msra.mxu0 0.0
    %1188 = vmatprep.mubr.f32.mxu0 0.0
    %1189 = vmatmul.mubr.f32.gmra.mrb[0].mxu0 %v326
    %v1190 = vpop.f32.mrb[0].mxu0
    %v1191 = vadd.f32 %v960, %v1190
    %v1192 = vpop.f32.mrb[0].mxu0
    %1193 = vdwg.mxu0
    %1195 = vrot.lane.b32.xlu0 %v1123, 32
    %v1196 = vpop.permute.xlu0 %1195
    %v1197 = vsel %vm121, %v1196, 0
    %1199 = vmatprep.subr.mxu0 0.0
    %1200 = vmatpush1.msra.mxu0 %v952
    %1201 = vmatprep.subr.mxu0 0.0
    %1202 = vmatpush1.msra.mxu0 %v953
    %1203 = vmatprep.subr.mxu0 0.0
    %1204 = vmatpush1.msra.mxu0 %v954
    %1205 = vmatprep.subr.mxu0 0.0
    %1206 = vmatpush1.msra.mxu0 %v955
    %1207 = vmatprep.subr.mxu0 0.0
    %1208 = vmatpush1.msra.mxu0 0.0
    %1209 = vmatprep.subr.mxu0 0.0
    %1210 = vmatpush1.msra.mxu0 0.0
    %1211 = vmatprep.subr.mxu0 0.0
    %1212 = vmatpush1.msra.mxu0 0.0
    %1213 = vmatprep.subr.mxu0 0.0
    %1214 = vmatpush1.msra.mxu0 0.0
    %1215 = vmatprep.subr.mxu0 0.0
    %1216 = vmatpush1.msra.mxu0 0.0
    %1217 = vmatprep.subr.mxu0 0.0
    %1218 = vmatpush1.msra.mxu0 0.0
    %1219 = vmatprep.subr.mxu0 0.0
    %1220 = vmatpush1.msra.mxu0 0.0
    %1221 = vmatprep.subr.mxu0 0.0
    %1222 = vmatpush1.msra.mxu0 0.0
    %1223 = vmatprep.subr.mxu0 0.0
    %1224 = vmatpush1.msra.mxu0 0.0
    %1225 = vmatprep.subr.mxu0 0.0
    %1226 = vmatpush1.msra.mxu0 0.0
    %1227 = vmatprep.subr.mxu0 0.0
    %1228 = vmatpush1.msra.mxu0 0.0
    %1229 = vmatprep.subr.mxu0 0.0
    %1230 = vmatpush1.msra.mxu0 0.0
    %1231 = vmatprep.subr.mxu0 0.0
    %1232 = vmatpush1.msra.mxu0 0.0
    %1233 = vmatprep.subr.mxu0 0.0
    %1234 = vmatpush1.msra.mxu0 0.0
    %1235 = vmatprep.subr.mxu0 0.0
    %1236 = vmatpush1.msra.mxu0 0.0
    %1237 = vmatprep.subr.mxu0 0.0
    %1238 = vmatpush1.msra.mxu0 0.0
    %1239 = vmatprep.subr.mxu0 0.0
    %1240 = vmatpush1.msra.mxu0 0.0
    %1241 = vmatprep.subr.mxu0 0.0
    %1242 = vmatpush1.msra.mxu0 0.0
    %1243 = vmatprep.subr.mxu0 0.0
    %1244 = vmatpush1.msra.mxu0 0.0
    %1245 = vmatprep.subr.mxu0 0.0
    %1246 = vmatpush1.msra.mxu0 0.0
    %1247 = vmatprep.subr.mxu0 0.0
    %1248 = vmatpush1.msra.mxu0 0.0
    %1249 = vmatprep.subr.mxu0 0.0
    %1250 = vmatpush1.msra.mxu0 0.0
    %1251 = vmatprep.subr.mxu0 0.0
    %1252 = vmatpush1.msra.mxu0 0.0
    %1253 = vmatprep.subr.mxu0 0.0
    %1254 = vmatpush1.msra.mxu0 0.0
    %1255 = vmatprep.subr.mxu0 0.0
    %1256 = vmatpush1.msra.mxu0 0.0
    %1257 = vmatprep.subr.mxu0 0.0
    %1258 = vmatpush1.msra.mxu0 0.0
    %1259 = vmatprep.subr.mxu0 0.0
    %1260 = vmatpush1.msra.mxu0 0.0
    %1261 = vmatprep.subr.mxu0 0.0
    %1262 = vmatpush1.msra.mxu0 0.0
    %1263 = vmatprep.mubr.f32.mxu0 0.0
    %1264 = vmatmul.mubr.f32.gmra.mrb[0].mxu0 %v1197
    %v1265 = vpop.f32.mrb[0].mxu0
    %v1266 = vadd.f32 0.0, %v1265
    %v1267 = vpop.f32.mrb[0].mxu0
    %1268 = vdwg.mxu0
    %v1269 = vadd.f32 %v1191, %v1266
    %v1270 = vmul.f32 %v1269, 0.5
    %v1271 = vtanh.pop %v1270
    %v1272 = vmul.f32 %v1271, 0.5
    %v1273 = vadd.f32 %v1272, 0.5
    %v1274 = vtanh.pop %v1269
    %v1275 = vmul.f32 %v1273, %v1117
    %1277 = vrot.lane.b32.xlu0 %v1274, 64
    %v1278 = vpop.permute.xlu0 %1277
    %v1280 = vmul.f32 %v1273, %v1278
    %1282 = vrot.lane.b32.xlu0 %v1280, 32
    %v1283 = vpop.permute.xlu0 %1282
    %v1285 = vadd.f32 %v1275, %v1283
    %v1286 = vtanh.pop %v1285
    %1288 = vrot.lane.b32.xlu0 %v1286, 64
    %v1289 = vpop.permute.xlu0 %1288
    %v1291 = vmul.f32 %v1273, %v1289
    %1292 = vmatprep.subr.mxu0 0.0
    %1293 = vmatpush1.msra.mxu0 %v948
    %1294 = vmatprep.subr.mxu0 0.0
    %1295 = vmatpush1.msra.mxu0 %v949
    %1296 = vmatprep.subr.mxu0 0.0
    %1297 = vmatpush1.msra.mxu0 %v950
    %1298 = vmatprep.subr.mxu0 0.0
    %1299 = vmatpush1.msra.mxu0 %v951
    %1300 = vmatprep.subr.mxu0 0.0
    %1301 = vmatpush1.msra.mxu0 0.0
    %1302 = vmatprep.subr.mxu0 0.0
    %1303 = vmatpush1.msra.mxu0 0.0
    %1304 = vmatprep.subr.mxu0 0.0
    %1305 = vmatpush1.msra.mxu0 0.0
    %1306 = vmatprep.subr.mxu0 0.0
    %1307 = vmatpush1.msra.mxu0 0.0
    %1308 = vmatprep.subr.mxu0 0.0
    %1309 = vmatpush1.msra.mxu0 0.0
    %1310 = vmatprep.subr.mxu0 0.0
    %1311 = vmatpush1.msra.mxu0 0.0
    %1312 = vmatprep.subr.mxu0 0.0
    %1313 = vmatpush1.msra.mxu0 0.0
    %1314 = vmatprep.subr.mxu0 0.0
    %1315 = vmatpush1.msra.mxu0 0.0
    %1316 = vmatprep.subr.mxu0 0.0
    %1317 = vmatpush1.msra.mxu0 0.0
    %1318 = vmatprep.subr.mxu0 0.0
    %1319 = vmatpush1.msra.mxu0 0.0
    %1320 = vmatprep.subr.mxu0 0.0
    %1321 = vmatpush1.msra.mxu0 0.0
    %1322 = vmatprep.subr.mxu0 0.0
    %1323 = vmatpush1.msra.mxu0 0.0
    %1324 = vmatprep.subr.mxu0 0.0
    %1325 = vmatpush1.msra.mxu0 0.0
    %1326 = vmatprep.subr.mxu0 0.0
    %1327 = vmatpush1.msra.mxu0 0.0
    %1328 = vmatprep.subr.mxu0 0.0
    %1329 = vmatpush1.msra.mxu0 0.0
    %1330 = vmatprep.subr.mxu0 0.0
    %1331 = vmatpush1.msra.mxu0 0.0
    %1332 = vmatprep.subr.mxu0 0.0
    %1333 = vmatpush1.msra.mxu0 0.0
    %1334 = vmatprep.subr.mxu0 0.0
    %1335 = vmatpush1.msra.mxu0 0.0
    %1336 = vmatprep.subr.mxu0 0.0
    %1337 = vmatpush1.msra.mxu0 0.0
    %1338 = vmatprep.subr.mxu0 0.0
    %1339 = vmatpush1.msra.mxu0 0.0
    %1340 = vmatprep.subr.mxu0 0.0
    %1341 = vmatpush1.msra.mxu0 0.0
    %1342 = vmatprep.subr.mxu0 0.0
    %1343 = vmatpush1.msra.mxu0 0.0
    %1344 = vmatprep.subr.mxu0 0.0
    %1345 = vmatpush1.msra.mxu0 0.0
    %1346 = vmatprep.subr.mxu0 0.0
    %1347 = vmatpush1.msra.mxu0 0.0
    %1348 = vmatprep.subr.mxu0 0.0
    %1349 = vmatpush1.msra.mxu0 0.0
    %1350 = vmatprep.subr.mxu0 0.0
    %1351 = vmatpush1.msra.mxu0 0.0
    %1352 = vmatprep.subr.mxu0 0.0
    %1353 = vmatpush1.msra.mxu0 0.0
    %1354 = vmatprep.subr.mxu0 0.0
    %1355 = vmatpush1.msra.mxu0 0.0
    %1356 = vmatprep.mubr.f32.mxu0 0.0
    %1357 = vmatmul.mubr.f32.gmra.mrb[0].mxu0 %v431
    %v1358 = vpop.f32.mrb[0].mxu0
    %v1359 = vadd.f32 %v960, %v1358
    %v1360 = vpop.f32.mrb[0].mxu0
    %1361 = vdwg.mxu0
    %1363 = vrot.lane.b32.xlu0 %v1291, 32
    %v1364 = vpop.permute.xlu0 %1363
    %v1365 = vsel %vm121, %v1364, 0
    %1367 = vmatprep.subr.mxu0 0.0
    %1368 = vmatpush1.msra.mxu0 %v952
    %1369 = vmatprep.subr.mxu0 0.0
    %1370 = vmatpush1.msra.mxu0 %v953
    %1371 = vmatprep.subr.mxu0 0.0
    %1372 = vmatpush1.msra.mxu0 %v954
    %1373 = vmatprep.subr.mxu0 0.0
    %1374 = vmatpush1.msra.mxu0 %v955
    %1375 = vmatprep.subr.mxu0 0.0
    %1376 = vmatpush1.msra.mxu0 0.0
    %1377 = vmatprep.subr.mxu0 0.0
    %1378 = vmatpush1.msra.mxu0 0.0
    %1379 = vmatprep.subr.mxu0 0.0
    %1380 = vmatpush1.msra.mxu0 0.0
    %1381 = vmatprep.subr.mxu0 0.0
    %1382 = vmatpush1.msra.mxu0 0.0
    %1383 = vmatprep.subr.mxu0 0.0
    %1384 = vmatpush1.msra.mxu0 0.0
    %1385 = vmatprep.subr.mxu0 0.0
    %1386 = vmatpush1.msra.mxu0 0.0
    %1387 = vmatprep.subr.mxu0 0.0
    %1388 = vmatpush1.msra.mxu0 0.0
    %1389 = vmatprep.subr.mxu0 0.0
    %1390 = vmatpush1.msra.mxu0 0.0
    %1391 = vmatprep.subr.mxu0 0.0
    %1392 = vmatpush1.msra.mxu0 0.0
    %1393 = vmatprep.subr.mxu0 0.0
    %1394 = vmatpush1.msra.mxu0 0.0
    %1395 = vmatprep.subr.mxu0 0.0
    %1396 = vmatpush1.msra.mxu0 0.0
    %1397 = vmatprep.subr.mxu0 0.0
    %1398 = vmatpush1.msra.mxu0 0.0
    %1399 = vmatprep.subr.mxu0 0.0
    %1400 = vmatpush1.msra.mxu0 0.0
    %1401 = vmatprep.subr.mxu0 0.0
    %1402 = vmatpush1.msra.mxu0 0.0
    %1403 = vmatprep.subr.mxu0 0.0
    %1404 = vmatpush1.msra.mxu0 0.0
    %1405 = vmatprep.subr.mxu0 0.0
    %1406 = vmatpush1.msra.mxu0 0.0
    %1407 = vmatprep.subr.mxu0 0.0
    %1408 = vmatpush1.msra.mxu0 0.0
    %1409 = vmatprep.subr.mxu0 0.0
    %1410 = vmatpush1.msra.mxu0 0.0
    %1411 = vmatprep.subr.mxu0 0.0
    %1412 = vmatpush1.msra.mxu0 0.0
    %1413 = vmatprep.subr.mxu0 0.0
    %1414 = vmatpush1.msra.mxu0 0.0
    %1415 = vmatprep.subr.mxu0 0.0
    %1416 = vmatpush1.msra.mxu0 0.0
    %1417 = vmatprep.subr.mxu0 0.0
    %1418 = vmatpush1.msra.mxu0 0.0
    %1419 = vmatprep.subr.mxu0 0.0
    %1420 = vmatpush1.msra.mxu0 0.0
    %1421 = vmatprep.subr.mxu0 0.0
    %1422 = vmatpush1.msra.mxu0 0.0
    %1423 = vmatprep.subr.mxu0 0.0
    %1424 = vmatpush1.msra.mxu0 0.0
    %1425 = vmatprep.subr.mxu0 0.0
    %1426 = vmatpush1.msra.mxu0 0.0
    %1427 = vmatprep.subr.mxu0 0.0
    %1428 = vmatpush1.msra.mxu0 0.0
    %1429 = vmatprep.subr.mxu0 0.0
    %1430 = vmatpush1.msra.mxu0 0.0
    %1431 = vmatprep.mubr.f32.mxu0 0.0
    %1432 = vmatmul.mubr.f32.gmra.mrb[0].mxu0 %v1365
    %v1433 = vpop.f32.mrb[0].mxu0
    %v1434 = vadd.f32 0.0, %v1433
    %v1435 = vpop.f32.mrb[0].mxu0
    %1436 = vdwg.mxu0
    %v1437 = vadd.f32 %v1359, %v1434
    %v1438 = vmul.f32 %v1437, 0.5
    %v1439 = vtanh.pop %v1438
    %v1440 = vmul.f32 %v1439, 0.5
    %v1441 = vadd.f32 %v1440, 0.5
    %v1442 = vtanh.pop %v1437
    %v1443 = vmul.f32 %v1441, %v1285
    %1445 = vrot.lane.b32.xlu0 %v1442, 64
    %v1446 = vpop.permute.xlu0 %1445
    %v1448 = vmul.f32 %v1441, %v1446
    %1450 = vrot.lane.b32.xlu0 %v1448, 32
    %v1451 = vpop.permute.xlu0 %1450
    %v1453 = vadd.f32 %v1443, %v1451
    %v1454 = vtanh.pop %v1453
    %1456 = vrot.lane.b32.xlu0 %v1454, 64
    %v1457 = vpop.permute.xlu0 %1456
    %v1459 = vmul.f32 %v1441, %v1457
    %1460 = vmatprep.subr.mxu0 0.0
    %1461 = vmatpush1.msra.mxu0 %v948
    %1462 = vmatprep.subr.mxu0 0.0
    %1463 = vmatpush1.msra.mxu0 %v949
    %1464 = vmatprep.subr.mxu0 0.0
    %1465 = vmatpush1.msra.mxu0 %v950
    %1466 = vmatprep.subr.mxu0 0.0
    %1467 = vmatpush1.msra.mxu0 %v951
    %1468 = vmatprep.subr.mxu0 0.0
    %1469 = vmatpush1.msra.mxu0 0.0
    %1470 = vmatprep.subr.mxu0 0.0
    %1471 = vmatpush1.msra.mxu0 0.0
    %1472 = vmatprep.subr.mxu0 0.0
    %1473 = vmatpush1.msra.mxu0 0.0
    %1474 = vmatprep.subr.mxu0 0.0
    %1475 = vmatpush1.msra.mxu0 0.0
    %1476 = vmatprep.subr.mxu0 0.0
    %1477 = vmatpush1.msra.mxu0 0.0
    %1478 = vmatprep.subr.mxu0 0.0
    %1479 = vmatpush1.msra.mxu0 0.0
    %1480 = vmatprep.subr.mxu0 0.0
    %1481 = vmatpush1.msra.mxu0 0.0
    %1482 = vmatprep.subr.mxu0 0.0
    %1483 = vmatpush1.msra.mxu0 0.0
    %1484 = vmatprep.subr.mxu0 0.0
    %1485 = vmatpush1.msra.mxu0 0.0
    %1486 = vmatprep.subr.mxu0 0.0
    %1487 = vmatpush1.msra.mxu0 0.0
    %1488 = vmatprep.subr.mxu0 0.0
    %1489 = vmatpush1.msra.mxu0 0.0
    %1490 = vmatprep.subr.mxu0 0.0
    %1491 = vmatpush1.msra.mxu0 0.0
    %1492 = vmatprep.subr.mxu0 0.0
    %1493 = vmatpush1.msra.mxu0 0.0
    %1494 = vmatprep.subr.mxu0 0.0
    %1495 = vmatpush1.msra.mxu0 0.0
    %1496 = vmatprep.subr.mxu0 0.0
    %1497 = vmatpush1.msra.mxu0 0.0
    %1498 = vmatprep.subr.mxu0 0.0
    %1499 = vmatpush1.msra.mxu0 0.0
    %1500 = vmatprep.subr.mxu0 0.0
    %1501 = vmatpush1.msra.mxu0 0.0
    %1502 = vmatprep.subr.mxu0 0.0
    %1503 = vmatpush1.msra.mxu0 0.0
    %1504 = vmatprep.subr.mxu0 0.0
    %1505 = vmatpush1.msra.mxu0 0.0
    %1506 = vmatprep.subr.mxu0 0.0
    %1507 = vmatpush1.msra.mxu0 0.0
    %1508 = vmatprep.subr.mxu0 0.0
    %1509 = vmatpush1.msra.mxu0 0.0
    %1510 = vmatprep.subr.mxu0 0.0
    %1511 = vmatpush1.msra.mxu0 0.0
    %1512 = vmatprep.subr.mxu0 0.0
    %1513 = vmatpush1.msra.mxu0 0.0
    %1514 = vmatprep.subr.mxu0 0.0
    %1515 = vmatpush1.msra.mxu0 0.0
    %1516 = vmatprep.subr.mxu0 0.0
    %1517 = vmatpush1.msra.mxu0 0.0
    %1518 = vmatprep.subr.mxu0 0.0
    %1519 = vmatpush1.msra.mxu0 0.0
    %1520 = vmatprep.subr.mxu0 0.0
    %1521 = vmatpush1.msra.mxu0 0.0
    %1522 = vmatprep.subr.mxu0 0.0
    %1523 = vmatpush1.msra.mxu0 0.0
    %1524 = vmatprep.mubr.f32.mxu0 0.0
    %1525 = vmatmul.mubr.f32.gmra.mrb[0].mxu0 %v536
    %v1526 = vpop.f32.mrb[0].mxu0
    %v1527 = vadd.f32 %v960, %v1526
    %v1528 = vpop.f32.mrb[0].mxu0
    %1529 = vdwg.mxu0
    %1531 = vrot.lane.b32.xlu0 %v1459, 32
    %v1532 = vpop.permute.xlu0 %1531
    %v1533 = vsel %vm121, %v1532, 0
    %1535 = vmatprep.subr.mxu0 0.0
    %1536 = vmatpush1.msra.mxu0 %v952
    %1537 = vmatprep.subr.mxu0 0.0
    %1538 = vmatpush1.msra.mxu0 %v953
    %1539 = vmatprep.subr.mxu0 0.0
    %1540 = vmatpush1.msra.mxu0 %v954
    %1541 = vmatprep.subr.mxu0 0.0
    %1542 = vmatpush1.msra.mxu0 %v955
    %1543 = vmatprep.subr.mxu0 0.0
    %1544 = vmatpush1.msra.mxu0 0.0
    %1545 = vmatprep.subr.mxu0 0.0
    %1546 = vmatpush1.msra.mxu0 0.0
    %1547 = vmatprep.subr.mxu0 0.0
    %1548 = vmatpush1.msra.mxu0 0.0
    %1549 = vmatprep.subr.mxu0 0.0
    %1550 = vmatpush1.msra.mxu0 0.0
    %1551 = vmatprep.subr.mxu0 0.0
    %1552 = vmatpush1.msra.mxu0 0.0
    %1553 = vmatprep.subr.mxu0 0.0
    %1554 = vmatpush1.msra.mxu0 0.0
    %1555 = vmatprep.subr.mxu0 0.0
    %1556 = vmatpush1.msra.mxu0 0.0
    %1557 = vmatprep.subr.mxu0 0.0
    %1558 = vmatpush1.msra.mxu0 0.0
    %1559 = vmatprep.subr.mxu0 0.0
    %1560 = vmatpush1.msra.mxu0 0.0
    %1561 = vmatprep.subr.mxu0 0.0
    %1562 = vmatpush1.msra.mxu0 0.0
    %1563 = vmatprep.subr.mxu0 0.0
    %1564 = vmatpush1.msra.mxu0 0.0
    %1565 = vmatprep.subr.mxu0 0.0
    %1566 = vmatpush1.msra.mxu0 0.0
    %1567 = vmatprep.subr.mxu0 0.0
    %1568 = vmatpush1.msra.mxu0 0.0
    %1569 = vmatprep.subr.mxu0 0.0
    %1570 = vmatpush1.msra.mxu0 0.0
    %1571 = vmatprep.subr.mxu0 0.0
    %1572 = vmatpush1.msra.mxu0 0.0
    %1573 = vmatprep.subr.mxu0 0.0
    %1574 = vmatpush1.msra.mxu0 0.0
    %1575 = vmatprep.subr.mxu0 0.0
    %1576 = vmatpush1.msra.mxu0 0.0
    %1577 = vmatprep.subr.mxu0 0.0
    %1578 = vmatpush1.msra.mxu0 0.0
    %1579 = vmatprep.subr.mxu0 0.0
    %1580 = vmatpush1.msra.mxu0 0.0
    %1581 = vmatprep.subr.mxu0 0.0
    %1582 = vmatpush1.msra.mxu0 0.0
    %1583 = vmatprep.subr.mxu0 0.0
    %1584 = vmatpush1.msra.mxu0 0.0
    %1585 = vmatprep.subr.mxu0 0.0
    %1586 = vmatpush1.msra.mxu0 0.0
    %1587 = vmatprep.subr.mxu0 0.0
    %1588 = vmatpush1.msra.mxu0 0.0
    %1589 = vmatprep.subr.mxu0 0.0
    %1590 = vmatpush1.msra.mxu0 0.0
    %1591 = vmatprep.subr.mxu0 0.0
    %1592 = vmatpush1.msra.mxu0 0.0
    %1593 = vmatprep.subr.mxu0 0.0
    %1594 = vmatpush1.msra.mxu0 0.0
    %1595 = vmatprep.subr.mxu0 0.0
    %1596 = vmatpush1.msra.mxu0 0.0
    %1597 = vmatprep.subr.mxu0 0.0
    %1598 = vmatpush1.msra.mxu0 0.0
    %1599 = vmatprep.mubr.f32.mxu0 0.0
    %1600 = vmatmul.mubr.f32.gmra.mrb[0].mxu0 %v1533
    %v1601 = vpop.f32.mrb[0].mxu0
    %v1602 = vadd.f32 0.0, %v1601
    %v1603 = vpop.f32.mrb[0].mxu0
    %1604 = vdwg.mxu0
    %v1605 = vadd.f32 %v1527, %v1602
    %v1606 = vmul.f32 %v1605, 0.5
    %v1607 = vtanh.pop %v1606
    %v1608 = vmul.f32 %v1607, 0.5
    %v1609 = vadd.f32 %v1608, 0.5
    %v1610 = vtanh.pop %v1605
    %v1611 = vmul.f32 %v1609, %v1453
    %1613 = vrot.lane.b32.xlu0 %v1610, 64
    %v1614 = vpop.permute.xlu0 %1613
    %v1616 = vmul.f32 %v1609, %v1614
    %1618 = vrot.lane.b32.xlu0 %v1616, 32
    %v1619 = vpop.permute.xlu0 %1618
    %v1621 = vadd.f32 %v1611, %v1619
    %v1622 = vtanh.pop %v1621
    %1624 = vrot.lane.b32.xlu0 %v1622, 64
    %v1625 = vpop.permute.xlu0 %1624
    %v1627 = vmul.f32 %v1609, %v1625
    %1628 = vmatprep.subr.mxu0 0.0
    %1629 = vmatpush1.msra.mxu0 %v948
    %1630 = vmatprep.subr.mxu0 0.0
    %1631 = vmatpush1.msra.mxu0 %v949
    %1632 = vmatprep.subr.mxu0 0.0
    %1633 = vmatpush1.msra.mxu0 %v950
    %1634 = vmatprep.subr.mxu0 0.0
    %1635 = vmatpush1.msra.mxu0 %v951
    %1636 = vmatprep.subr.mxu0 0.0
    %1637 = vmatpush1.msra.mxu0 0.0
    %1638 = vmatprep.subr.mxu0 0.0
    %1639 = vmatpush1.msra.mxu0 0.0
    %1640 = vmatprep.subr.mxu0 0.0
    %1641 = vmatpush1.msra.mxu0 0.0
    %1642 = vmatprep.subr.mxu0 0.0
    %1643 = vmatpush1.msra.mxu0 0.0
    %1644 = vmatprep.subr.mxu0 0.0
    %1645 = vmatpush1.msra.mxu0 0.0
    %1646 = vmatprep.subr.mxu0 0.0
    %1647 = vmatpush1.msra.mxu0 0.0
    %1648 = vmatprep.subr.mxu0 0.0
    %1649 = vmatpush1.msra.mxu0 0.0
    %1650 = vmatprep.subr.mxu0 0.0
    %1651 = vmatpush1.msra.mxu0 0.0
    %1652 = vmatprep.subr.mxu0 0.0
    %1653 = vmatpush1.msra.mxu0 0.0
    %1654 = vmatprep.subr.mxu0 0.0
    %1655 = vmatpush1.msra.mxu0 0.0
    %1656 = vmatprep.subr.mxu0 0.0
    %1657 = vmatpush1.msra.mxu0 0.0
    %1658 = vmatprep.subr.mxu0 0.0
    %1659 = vmatpush1.msra.mxu0 0.0
    %1660 = vmatprep.subr.mxu0 0.0
    %1661 = vmatpush1.msra.mxu0 0.0
    %1662 = vmatprep.subr.mxu0 0.0
    %1663 = vmatpush1.msra.mxu0 0.0
    %1664 = vmatprep.subr.mxu0 0.0
    %1665 = vmatpush1.msra.mxu0 0.0
    %1666 = vmatprep.subr.mxu0 0.0
    %1667 = vmatpush1.msra.mxu0 0.0
    %1668 = vmatprep.subr.mxu0 0.0
    %1669 = vmatpush1.msra.mxu0 0.0
    %1670 = vmatprep.subr.mxu0 0.0
    %1671 = vmatpush1.msra.mxu0 0.0
    %1672 = vmatprep.subr.mxu0 0.0
    %1673 = vmatpush1.msra.mxu0 0.0
    %1674 = vmatprep.subr.mxu0 0.0
    %1675 = vmatpush1.msra.mxu0 0.0
    %1676 = vmatprep.subr.mxu0 0.0
    %1677 = vmatpush1.msra.mxu0 0.0
    %1678 = vmatprep.subr.mxu0 0.0
    %1679 = vmatpush1.msra.mxu0 0.0
    %1680 = vmatprep.subr.mxu0 0.0
    %1681 = vmatpush1.msra.mxu0 0.0
    %1682 = vmatprep.subr.mxu0 0.0
    %1683 = vmatpush1.msra.mxu0 0.0
    %1684 = vmatprep.subr.mxu0 0.0
    %1685 = vmatpush1.msra.mxu0 0.0
    %1686 = vmatprep.subr.mxu0 0.0
    %1687 = vmatpush1.msra.mxu0 0.0
    %1688 = vmatprep.subr.mxu0 0.0
    %1689 = vmatpush1.msra.mxu0 0.0
    %1690 = vmatprep.subr.mxu0 0.0
    %1691 = vmatpush1.msra.mxu0 0.0
    %1692 = vmatprep.mubr.f32.mxu0 0.0
    %1693 = vmatmul.mubr.f32.gmra.mrb[0].mxu0 %v637
    %v1694 = vpop.f32.mrb[0].mxu0
    %v1695 = vadd.f32 %v960, %v1694
    %v1696 = vpop.f32.mrb[0].mxu0
    %1697 = vdwg.mxu0
    %1699 = vrot.lane.b32.xlu0 %v1627, 32
    %v1700 = vpop.permute.xlu0 %1699
    %v1701 = vsel %vm121, %v1700, 0
    %1703 = vmatprep.subr.mxu0 0.0
    %1704 = vmatpush1.msra.mxu0 %v952
    %1705 = vmatprep.subr.mxu0 0.0
    %1706 = vmatpush1.msra.mxu0 %v953
    %1707 = vmatprep.subr.mxu0 0.0
    %1708 = vmatpush1.msra.mxu0 %v954
    %1709 = vmatprep.subr.mxu0 0.0
    %1710 = vmatpush1.msra.mxu0 %v955
    %1711 = vmatprep.subr.mxu0 0.0
    %1712 = vmatpush1.msra.mxu0 0.0
    %1713 = vmatprep.subr.mxu0 0.0
    %1714 = vmatpush1.msra.mxu0 0.0
    %1715 = vmatprep.subr.mxu0 0.0
    %1716 = vmatpush1.msra.mxu0 0.0
    %1717 = vmatprep.subr.mxu0 0.0
    %1718 = vmatpush1.msra.mxu0 0.0
    %1719 = vmatprep.subr.mxu0 0.0
    %1720 = vmatpush1.msra.mxu0 0.0
    %1721 = vmatprep.subr.mxu0 0.0
    %1722 = vmatpush1.msra.mxu0 0.0
    %1723 = vmatprep.subr.mxu0 0.0
    %1724 = vmatpush1.msra.mxu0 0.0
    %1725 = vmatprep.subr.mxu0 0.0
    %1726 = vmatpush1.msra.mxu0 0.0
    %1727 = vmatprep.subr.mxu0 0.0
    %1728 = vmatpush1.msra.mxu0 0.0
    %1729 = vmatprep.subr.mxu0 0.0
    %1730 = vmatpush1.msra.mxu0 0.0
    %1731 = vmatprep.subr.mxu0 0.0
    %1732 = vmatpush1.msra.mxu0 0.0
    %1733 = vmatprep.subr.mxu0 0.0
    %1734 = vmatpush1.msra.mxu0 0.0
    %1735 = vmatprep.subr.mxu0 0.0
    %1736 = vmatpush1.msra.mxu0 0.0
    %1737 = vmatprep.subr.mxu0 0.0
    %1738 = vmatpush1.msra.mxu0 0.0
    %1739 = vmatprep.subr.mxu0 0.0
    %1740 = vmatpush1.msra.mxu0 0.0
    %1741 = vmatprep.subr.mxu0 0.0
    %1742 = vmatpush1.msra.mxu0 0.0
    %1743 = vmatprep.subr.mxu0 0.0
    %1744 = vmatpush1.msra.mxu0 0.0
    %1745 = vmatprep.subr.mxu0 0.0
    %1746 = vmatpush1.msra.mxu0 0.0
    %1747 = vmatprep.subr.mxu0 0.0
    %1748 = vmatpush1.msra.mxu0 0.0
    %1749 = vmatprep.subr.mxu0 0.0
    %1750 = vmatpush1.msra.mxu0 0.0
    %1751 = vmatprep.subr.mxu0 0.0
    %1752 = vmatpush1.msra.mxu0 0.0
    %1753 = vmatprep.subr.mxu0 0.0
    %1754 = vmatpush1.msra.mxu0 0.0
    %1755 = vmatprep.subr.mxu0 0.0
    %1756 = vmatpush1.msra.mxu0 0.0
    %1757 = vmatprep.subr.mxu0 0.0
    %1758 = vmatpush1.msra.mxu0 0.0
    %1759 = vmatprep.subr.mxu0 0.0
    %1760 = vmatpush1.msra.mxu0 0.0
    %1761 = vmatprep.subr.mxu0 0.0
    %1762 = vmatpush1.msra.mxu0 0.0
    %1763 = vmatprep.subr.mxu0 0.0
    %1764 = vmatpush1.msra.mxu0 0.0
    %1765 = vmatprep.subr.mxu0 0.0
    %1766 = vmatpush1.msra.mxu0 0.0
    %1767 = vmatprep.mubr.f32.mxu0 0.0
    %1768 = vmatmul.mubr.f32.gmra.mrb[0].mxu0 %v1701
    %v1769 = vpop.f32.mrb[0].mxu0
    %v1770 = vadd.f32 0.0, %v1769
    %v1771 = vpop.f32.mrb[0].mxu0
    %1772 = vdwg.mxu0
    %v1773 = vadd.f32 %v1695, %v1770
    %v1774 = vmul.f32 %v1773, 0.5
    %v1775 = vtanh.pop %v1774
    %v1776 = vmul.f32 %v1775, 0.5
    %v1777 = vadd.f32 %v1776, 0.5
    %v1778 = vtanh.pop %v1773
    %v1779 = vmul.f32 %v1777, %v1621
    %1781 = vrot.lane.b32.xlu0 %v1778, 64
    %v1782 = vpop.permute.xlu0 %1781
    %v1784 = vmul.f32 %v1777, %v1782
    %1786 = vrot.lane.b32.xlu0 %v1784, 32
    %v1787 = vpop.permute.xlu0 %1786
    %v1789 = vadd.f32 %v1779, %v1787
    %v1790 = vtanh.pop %v1789
    %1792 = vrot.lane.b32.xlu0 %v1790, 64
    %v1793 = vpop.permute.xlu0 %1792
    %v1795 = vmul.f32 %v1777, %v1793
    %1796 = vmatprep.subr.mxu0 0.0
    %1797 = vmatpush1.msra.mxu0 %v948
    %1798 = vmatprep.subr.mxu0 0.0
    %1799 = vmatpush1.msra.mxu0 %v949
    %1800 = vmatprep.subr.mxu0 0.0
    %1801 = vmatpush1.msra.mxu0 %v950
    %1802 = vmatprep.subr.mxu0 0.0
    %1803 = vmatpush1.msra.mxu0 %v951
    %1804 = vmatprep.subr.mxu0 0.0
    %1805 = vmatpush1.msra.mxu0 0.0
    %1806 = vmatprep.subr.mxu0 0.0
    %1807 = vmatpush1.msra.mxu0 0.0
    %1808 = vmatprep.subr.mxu0 0.0
    %1809 = vmatpush1.msra.mxu0 0.0
    %1810 = vmatprep.subr.mxu0 0.0
    %1811 = vmatpush1.msra.mxu0 0.0
    %1812 = vmatprep.subr.mxu0 0.0
    %1813 = vmatpush1.msra.mxu0 0.0
    %1814 = vmatprep.subr.mxu0 0.0
    %1815 = vmatpush1.msra.mxu0 0.0
    %1816 = vmatprep.subr.mxu0 0.0
    %1817 = vmatpush1.msra.mxu0 0.0
    %1818 = vmatprep.subr.mxu0 0.0
    %1819 = vmatpush1.msra.mxu0 0.0
    %1820 = vmatprep.subr.mxu0 0.0
    %1821 = vmatpush1.msra.mxu0 0.0
    %1822 = vmatprep.subr.mxu0 0.0
    %1823 = vmatpush1.msra.mxu0 0.0
    %1824 = vmatprep.subr.mxu0 0.0
    %1825 = vmatpush1.msra.mxu0 0.0
    %1826 = vmatprep.subr.mxu0 0.0
    %1827 = vmatpush1.msra.mxu0 0.0
    %1828 = vmatprep.subr.mxu0 0.0
    %1829 = vmatpush1.msra.mxu0 0.0
    %1830 = vmatprep.subr.mxu0 0.0
    %1831 = vmatpush1.msra.mxu0 0.0
    %1832 = vmatprep.subr.mxu0 0.0
    %1833 = vmatpush1.msra.mxu0 0.0
    %1834 = vmatprep.subr.mxu0 0.0
    %1835 = vmatpush1.msra.mxu0 0.0
    %1836 = vmatprep.subr.mxu0 0.0
    %1837 = vmatpush1.msra.mxu0 0.0
    %1838 = vmatprep.subr.mxu0 0.0
    %1839 = vmatpush1.msra.mxu0 0.0
    %1840 = vmatprep.subr.mxu0 0.0
    %1841 = vmatpush1.msra.mxu0 0.0
    %1842 = vmatprep.subr.mxu0 0.0
    %1843 = vmatpush1.msra.mxu0 0.0
    %1844 = vmatprep.subr.mxu0 0.0
    %1845 = vmatpush1.msra.mxu0 0.0
    %1846 = vmatprep.subr.mxu0 0.0
    %1847 = vmatpush1.msra.mxu0 0.0
    %1848 = vmatprep.subr.mxu0 0.0
    %1849 = vmatpush1.msra.mxu0 0.0
    %1850 = vmatprep.subr.mxu0 0.0
    %1851 = vmatpush1.msra.mxu0 0.0
    %1852 = vmatprep.subr.mxu0 0.0
    %1853 = vmatpush1.msra.mxu0 0.0
    %1854 = vmatprep.subr.mxu0 0.0
    %1855 = vmatpush1.msra.mxu0 0.0
    %1856 = vmatprep.subr.mxu0 0.0
    %1857 = vmatpush1.msra.mxu0 0.0
    %1858 = vmatprep.subr.mxu0 0.0
    %1859 = vmatpush1.msra.mxu0 0.0
    %1860 = vmatprep.mubr.f32.mxu0 0.0
    %1861 = vmatmul.mubr.f32.gmra.mrb[0].mxu0 %v742
    %v1862 = vpop.f32.mrb[0].mxu0
    %v1863 = vadd.f32 %v960, %v1862
    %v1864 = vpop.f32.mrb[0].mxu0
    %1865 = vdwg.mxu0
    %1867 = vrot.lane.b32.xlu0 %v1795, 32
    %v1868 = vpop.permute.xlu0 %1867
    %v1869 = vsel %vm121, %v1868, 0
    %1871 = vmatprep.subr.mxu0 0.0
    %1872 = vmatpush1.msra.mxu0 %v952
    %1873 = vmatprep.subr.mxu0 0.0
    %1874 = vmatpush1.msra.mxu0 %v953
    %1875 = vmatprep.subr.mxu0 0.0
    %1876 = vmatpush1.msra.mxu0 %v954
    %1877 = vmatprep.subr.mxu0 0.0
    %1878 = vmatpush1.msra.mxu0 %v955
    %1879 = vmatprep.subr.mxu0 0.0
    %1880 = vmatpush1.msra.mxu0 0.0
    %1881 = vmatprep.subr.mxu0 0.0
    %1882 = vmatpush1.msra.mxu0 0.0
    %1883 = vmatprep.subr.mxu0 0.0
    %1884 = vmatpush1.msra.mxu0 0.0
    %1885 = vmatprep.subr.mxu0 0.0
    %1886 = vmatpush1.msra.mxu0 0.0
    %1887 = vmatprep.subr.mxu0 0.0
    %1888 = vmatpush1.msra.mxu0 0.0
    %1889 = vmatprep.subr.mxu0 0.0
    %1890 = vmatpush1.msra.mxu0 0.0
    %1891 = vmatprep.subr.mxu0 0.0
    %1892 = vmatpush1.msra.mxu0 0.0
    %1893 = vmatprep.subr.mxu0 0.0
    %1894 = vmatpush1.msra.mxu0 0.0
    %1895 = vmatprep.subr.mxu0 0.0
    %1896 = vmatpush1.msra.mxu0 0.0
    %1897 = vmatprep.subr.mxu0 0.0
    %1898 = vmatpush1.msra.mxu0 0.0
    %1899 = vmatprep.subr.mxu0 0.0
    %1900 = vmatpush1.msra.mxu0 0.0
    %1901 = vmatprep.subr.mxu0 0.0
    %1902 = vmatpush1.msra.mxu0 0.0
    %1903 = vmatprep.subr.mxu0 0.0
    %1904 = vmatpush1.msra.mxu0 0.0
    %1905 = vmatprep.subr.mxu0 0.0
    %1906 = vmatpush1.msra.mxu0 0.0
    %1907 = vmatprep.subr.mxu0 0.0
    %1908 = vmatpush1.msra.mxu0 0.0
    %1909 = vmatprep.subr.mxu0 0.0
    %1910 = vmatpush1.msra.mxu0 0.0
    %1911 = vmatprep.subr.mxu0 0.0
    %1912 = vmatpush1.msra.mxu0 0.0
    %1913 = vmatprep.subr.mxu0 0.0
    %1914 = vmatpush1.msra.mxu0 0.0
    %1915 = vmatprep.subr.mxu0 0.0
    %1916 = vmatpush1.msra.mxu0 0.0
    %1917 = vmatprep.subr.mxu0 0.0
    %1918 = vmatpush1.msra.mxu0 0.0
    %1919 = vmatprep.subr.mxu0 0.0
    %1920 = vmatpush1.msra.mxu0 0.0
    %1921 = vmatprep.subr.mxu0 0.0
    %1922 = vmatpush1.msra.mxu0 0.0
    %1923 = vmatprep.subr.mxu0 0.0
    %1924 = vmatpush1.msra.mxu0 0.0
    %1925 = vmatprep.subr.mxu0 0.0
    %1926 = vmatpush1.msra.mxu0 0.0
    %1927 = vmatprep.subr.mxu0 0.0
    %1928 = vmatpush1.msra.mxu0 0.0
    %1929 = vmatprep.subr.mxu0 0.0
    %1930 = vmatpush1.msra.mxu0 0.0
    %1931 = vmatprep.subr.mxu0 0.0
    %1932 = vmatpush1.msra.mxu0 0.0
    %1933 = vmatprep.subr.mxu0 0.0
    %1934 = vmatpush1.msra.mxu0 0.0
    %1935 = vmatprep.mubr.f32.mxu0 0.0
    %1936 = vmatmul.mubr.f32.gmra.mrb[0].mxu0 %v1869
    %v1937 = vpop.f32.mrb[0].mxu0
    %v1938 = vadd.f32 0.0, %v1937
    %v1939 = vpop.f32.mrb[0].mxu0
    %1940 = vdwg.mxu0
    %v1941 = vadd.f32 %v1863, %v1938
    %v1942 = vmul.f32 %v1941, 0.5
    %v1943 = vtanh.pop %v1942
    %v1944 = vmul.f32 %v1943, 0.5
    %v1945 = vadd.f32 %v1944, 0.5
    %v1946 = vtanh.pop %v1941
    %v1947 = vmul.f32 %v1945, %v1789
    %1949 = vrot.lane.b32.xlu0 %v1946, 64
    %v1950 = vpop.permute.xlu0 %1949
    %v1952 = vmul.f32 %v1945, %v1950
    %1954 = vrot.lane.b32.xlu0 %v1952, 32
    %v1955 = vpop.permute.xlu0 %1954
    %v1957 = vadd.f32 %v1947, %v1955
    %v1958 = vtanh.pop %v1957
    %1960 = vrot.lane.b32.xlu0 %v1958, 64
    %v1961 = vpop.permute.xlu0 %1960
    %v1963 = vmul.f32 %v1945, %v1961
    %1964 = vmatprep.subr.mxu0 0.0
    %1965 = vmatpush1.msra.mxu0 %v948
    %1966 = vmatprep.subr.mxu0 0.0
    %1967 = vmatpush1.msra.mxu0 %v949
    %1968 = vmatprep.subr.mxu0 0.0
    %1969 = vmatpush1.msra.mxu0 %v950
    %1970 = vmatprep.subr.mxu0 0.0
    %1971 = vmatpush1.msra.mxu0 %v951
    %1972 = vmatprep.subr.mxu0 0.0
    %1973 = vmatpush1.msra.mxu0 0.0
    %1974 = vmatprep.subr.mxu0 0.0
    %1975 = vmatpush1.msra.mxu0 0.0
    %1976 = vmatprep.subr.mxu0 0.0
    %1977 = vmatpush1.msra.mxu0 0.0
    %1978 = vmatprep.subr.mxu0 0.0
    %1979 = vmatpush1.msra.mxu0 0.0
    %1980 = vmatprep.subr.mxu0 0.0
    %1981 = vmatpush1.msra.mxu0 0.0
    %1982 = vmatprep.subr.mxu0 0.0
    %1983 = vmatpush1.msra.mxu0 0.0
    %1984 = vmatprep.subr.mxu0 0.0
    %1985 = vmatpush1.msra.mxu0 0.0
    %1986 = vmatprep.subr.mxu0 0.0
    %1987 = vmatpush1.msra.mxu0 0.0
    %1988 = vmatprep.subr.mxu0 0.0
    %1989 = vmatpush1.msra.mxu0 0.0
    %1990 = vmatprep.subr.mxu0 0.0
    %1991 = vmatpush1.msra.mxu0 0.0
    %1992 = vmatprep.subr.mxu0 0.0
    %1993 = vmatpush1.msra.mxu0 0.0
    %1994 = vmatprep.subr.mxu0 0.0
    %1995 = vmatpush1.msra.mxu0 0.0
    %1996 = vmatprep.subr.mxu0 0.0
    %1997 = vmatpush1.msra.mxu0 0.0
    %1998 = vmatprep.subr.mxu0 0.0
    %1999 = vmatpush1.msra.mxu0 0.0
    %2000 = vmatprep.subr.mxu0 0.0
    %2001 = vmatpush1.msra.mxu0 0.0
    %2002 = vmatprep.subr.mxu0 0.0
    %2003 = vmatpush1.msra.mxu0 0.0
    %2004 = vmatprep.subr.mxu0 0.0
    %2005 = vmatpush1.msra.mxu0 0.0
    %2006 = vmatprep.subr.mxu0 0.0
    %2007 = vmatpush1.msra.mxu0 0.0
    %2008 = vmatprep.subr.mxu0 0.0
    %2009 = vmatpush1.msra.mxu0 0.0
    %2010 = vmatprep.subr.mxu0 0.0
    %2011 = vmatpush1.msra.mxu0 0.0
    %2012 = vmatprep.subr.mxu0 0.0
    %2013 = vmatpush1.msra.mxu0 0.0
    %2014 = vmatprep.subr.mxu0 0.0
    %2015 = vmatpush1.msra.mxu0 0.0
    %2016 = vmatprep.subr.mxu0 0.0
    %2017 = vmatpush1.msra.mxu0 0.0
    %2018 = vmatprep.subr.mxu0 0.0
    %2019 = vmatpush1.msra.mxu0 0.0
    %2020 = vmatprep.subr.mxu0 0.0
    %2021 = vmatpush1.msra.mxu0 0.0
    %2022 = vmatprep.subr.mxu0 0.0
    %2023 = vmatpush1.msra.mxu0 0.0
    %2024 = vmatprep.subr.mxu0 0.0
    %2025 = vmatpush1.msra.mxu0 0.0
    %2026 = vmatprep.subr.mxu0 0.0
    %2027 = vmatpush1.msra.mxu0 0.0
    %2028 = vmatprep.mubr.f32.mxu0 0.0
    %2029 = vmatmul.mubr.f32.gmra.mrb[0].mxu0 %v847
    %v2030 = vpop.f32.mrb[0].mxu0
    %v2031 = vadd.f32 %v960, %v2030
    %v2032 = vpop.f32.mrb[0].mxu0
    %2033 = vdwg.mxu0
    %2035 = vrot.lane.b32.xlu0 %v1963, 32
    %v2036 = vpop.permute.xlu0 %2035
    %v2037 = vsel %vm121, %v2036, 0
    %2039 = vmatprep.subr.mxu0 0.0
    %2040 = vmatpush1.msra.mxu0 %v952
    %2041 = vmatprep.subr.mxu0 0.0
    %2042 = vmatpush1.msra.mxu0 %v953
    %2043 = vmatprep.subr.mxu0 0.0
    %2044 = vmatpush1.msra.mxu0 %v954
    %2045 = vmatprep.subr.mxu0 0.0
    %2046 = vmatpush1.msra.mxu0 %v955
    %2047 = vmatprep.subr.mxu0 0.0
    %2048 = vmatpush1.msra.mxu0 0.0
    %2049 = vmatprep.subr.mxu0 0.0
    %2050 = vmatpush1.msra.mxu0 0.0
    %2051 = vmatprep.subr.mxu0 0.0
    %2052 = vmatpush1.msra.mxu0 0.0
    %2053 = vmatprep.subr.mxu0 0.0
    %2054 = vmatpush1.msra.mxu0 0.0
    %2055 = vmatprep.subr.mxu0 0.0
    %2056 = vmatpush1.msra.mxu0 0.0
    %2057 = vmatprep.subr.mxu0 0.0
    %2058 = vmatpush1.msra.mxu0 0.0
    %2059 = vmatprep.subr.mxu0 0.0
    %2060 = vmatpush1.msra.mxu0 0.0
    %2061 = vmatprep.subr.mxu0 0.0
    %2062 = vmatpush1.msra.mxu0 0.0
    %2063 = vmatprep.subr.mxu0 0.0
    %2064 = vmatpush1.msra.mxu0 0.0
    %2065 = vmatprep.subr.mxu0 0.0
    %2066 = vmatpush1.msra.mxu0 0.0
    %2067 = vmatprep.subr.mxu0 0.0
    %2068 = vmatpush1.msra.mxu0 0.0
    %2069 = vmatprep.subr.mxu0 0.0
    %2070 = vmatpush1.msra.mxu0 0.0
    %2071 = vmatprep.subr.mxu0 0.0
    %2072 = vmatpush1.msra.mxu0 0.0
    %2073 = vmatprep.subr.mxu0 0.0
    %2074 = vmatpush1.msra.mxu0 0.0
    %2075 = vmatprep.subr.mxu0 0.0
    %2076 = vmatpush1.msra.mxu0 0.0
    %2077 = vmatprep.subr.mxu0 0.0
    %2078 = vmatpush1.msra.mxu0 0.0
    %2079 = vmatprep.subr.mxu0 0.0
    %2080 = vmatpush1.msra.mxu0 0.0
    %2081 = vmatprep.subr.mxu0 0.0
    %2082 = vmatpush1.msra.mxu0 0.0
    %2083 = vmatprep.subr.mxu0 0.0
    %2084 = vmatpush1.msra.mxu0 0.0
    %2085 = vmatprep.subr.mxu0 0.0
    %2086 = vmatpush1.msra.mxu0 0.0
    %2087 = vmatprep.subr.mxu0 0.0
    %2088 = vmatpush1.msra.mxu0 0.0
    %2089 = vmatprep.subr.mxu0 0.0
    %2090 = vmatpush1.msra.mxu0 0.0
    %2091 = vmatprep.subr.mxu0 0.0
    %2092 = vmatpush1.msra.mxu0 0.0
    %2093 = vmatprep.subr.mxu0 0.0
    %2094 = vmatpush1.msra.mxu0 0.0
    %2095 = vmatprep.subr.mxu0 0.0
    %2096 = vmatpush1.msra.mxu0 0.0
    %2097 = vmatprep.subr.mxu0 0.0
    %2098 = vmatpush1.msra.mxu0 0.0
    %2099 = vmatprep.subr.mxu0 0.0
    %2100 = vmatpush1.msra.mxu0 0.0
    %2101 = vmatprep.subr.mxu0 0.0
    %2102 = vmatpush1.msra.mxu0 0.0
    %2103 = vmatprep.mubr.f32.mxu0 0.0
    %2104 = vmatmul.mubr.f32.gmra.mrb[0].mxu0 %v2037
    %v2105 = vpop.f32.mrb[0].mxu0
    %v2106 = vadd.f32 0.0, %v2105
    %v2107 = vpop.f32.mrb[0].mxu0
    %2108 = vdwg.mxu0
    %v2109 = vadd.f32 %v2031, %v2106
    %v2110 = vmul.f32 %v2109, 0.5
    %v2111 = vtanh.pop %v2110
    %v2112 = vmul.f32 %v2111, 0.5
    %v2113 = vadd.f32 %v2112, 0.5
    %v2114 = vtanh.pop %v2109
    %v2115 = vmul.f32 %v2113, %v1957
    %2117 = vrot.lane.b32.xlu0 %v2114, 64
    %v2118 = vpop.permute.xlu0 %2117
    %v2120 = vmul.f32 %v2113, %v2118
    %2122 = vrot.lane.b32.xlu0 %v2120, 32
    %v2123 = vpop.permute.xlu0 %2122
    %v2125 = vadd.f32 %v2115, %v2123
    %v2126 = vtanh.pop %v2125
    %2128 = vrot.lane.b32.xlu0 %v2126, 64
    %v2129 = vpop.permute.xlu0 %2128
    %v2131 = vmul.f32 %v2113, %v2129
    %v2133 = vrot.slane %v947, 6
    %2134 = vrot.lane.b32.xlu0 %v2133, 32
    %v2135 = vpop.permute.xlu0 %2134
    %v2136 = vsel %vm121, %v2135, 0
    %2138 = vmatprep.subr.mxu0 0.0
    %2139 = vmatpush1.msra.mxu0 %v948
    %2140 = vmatprep.subr.mxu0 0.0
    %2141 = vmatpush1.msra.mxu0 %v949
    %2142 = vmatprep.subr.mxu0 0.0
    %2143 = vmatpush1.msra.mxu0 %v950
    %2144 = vmatprep.subr.mxu0 0.0
    %2145 = vmatpush1.msra.mxu0 %v951
    %2146 = vmatprep.subr.mxu0 0.0
    %2147 = vmatpush1.msra.mxu0 0.0
    %2148 = vmatprep.subr.mxu0 0.0
    %2149 = vmatpush1.msra.mxu0 0.0
    %2150 = vmatprep.subr.mxu0 0.0
    %2151 = vmatpush1.msra.mxu0 0.0
    %2152 = vmatprep.subr.mxu0 0.0
    %2153 = vmatpush1.msra.mxu0 0.0
    %2154 = vmatprep.subr.mxu0 0.0
    %2155 = vmatpush1.msra.mxu0 0.0
    %2156 = vmatprep.subr.mxu0 0.0
    %2157 = vmatpush1.msra.mxu0 0.0
    %2158 = vmatprep.subr.mxu0 0.0
    %2159 = vmatpush1.msra.mxu0 0.0
    %2160 = vmatprep.subr.mxu0 0.0
    %2161 = vmatpush1.msra.mxu0 0.0
    %2162 = vmatprep.subr.mxu0 0.0
    %2163 = vmatpush1.msra.mxu0 0.0
    %2164 = vmatprep.subr.mxu0 0.0
    %2165 = vmatpush1.msra.mxu0 0.0
    %2166 = vmatprep.subr.mxu0 0.0
    %2167 = vmatpush1.msra.mxu0 0.0
    %2168 = vmatprep.subr.mxu0 0.0
    %2169 = vmatpush1.msra.mxu0 0.0
    %2170 = vmatprep.subr.mxu0 0.0
    %2171 = vmatpush1.msra.mxu0 0.0
    %2172 = vmatprep.subr.mxu0 0.0
    %2173 = vmatpush1.msra.mxu0 0.0
    %2174 = vmatprep.subr.mxu0 0.0
    %2175 = vmatpush1.msra.mxu0 0.0
    %2176 = vmatprep.subr.mxu0 0.0
    %2177 = vmatpush1.msra.mxu0 0.0
    %2178 = vmatprep.subr.mxu0 0.0
    %2179 = vmatpush1.msra.mxu0 0.0
    %2180 = vmatprep.subr.mxu0 0.0
    %2181 = vmatpush1.msra.mxu0 0.0
    %2182 = vmatprep.subr.mxu0 0.0
    %2183 = vmatpush1.msra.mxu0 0.0
    %2184 = vmatprep.subr.mxu0 0.0
    %2185 = vmatpush1.msra.mxu0 0.0
    %2186 = vmatprep.subr.mxu0 0.0
    %2187 = vmatpush1.msra.mxu0 0.0
    %2188 = vmatprep.subr.mxu0 0.0
    %2189 = vmatpush1.msra.mxu0 0.0
    %2190 = vmatprep.subr.mxu0 0.0
    %2191 = vmatpush1.msra.mxu0 0.0
    %2192 = vmatprep.subr.mxu0 0.0
    %2193 = vmatpush1.msra.mxu0 0.0
    %2194 = vmatprep.subr.mxu0 0.0
    %2195 = vmatpush1.msra.mxu0 0.0
    %2196 = vmatprep.subr.mxu0 0.0
    %2197 = vmatpush1.msra.mxu0 0.0
    %2198 = vmatprep.subr.mxu0 0.0
    %2199 = vmatpush1.msra.mxu0 0.0
    %2200 = vmatprep.subr.mxu0 0.0
    %2201 = vmatpush1.msra.mxu0 0.0
    %2202 = vmatprep.mubr.f32.mxu0 0.0
    %2203 = vmatmul.mubr.f32.gmra.mrb[0].mxu0 %v2136
    %v2204 = vpop.f32.mrb[0].mxu0
    %v2205 = vadd.f32 %v960, %v2204
    %v2206 = vpop.f32.mrb[0].mxu0
    %2207 = vdwg.mxu0
    %2209 = vrot.lane.b32.xlu0 %v2131, 32
    %v2210 = vpop.permute.xlu0 %2209
    %v2211 = vsel %vm121, %v2210, 0
    %2213 = vmatprep.subr.mxu0 0.0
    %2214 = vmatpush1.msra.mxu0 %v952
    %2215 = vmatprep.subr.mxu0 0.0
    %2216 = vmatpush1.msra.mxu0 %v953
    %2217 = vmatprep.subr.mxu0 0.0
    %2218 = vmatpush1.msra.mxu0 %v954
    %2219 = vmatprep.subr.mxu0 0.0
    %2220 = vmatpush1.msra.mxu0 %v955
    %2221 = vmatprep.subr.mxu0 0.0
    %2222 = vmatpush1.msra.mxu0 0.0
    %2223 = vmatprep.subr.mxu0 0.0
    %2224 = vmatpush1.msra.mxu0 0.0
    %2225 = vmatprep.subr.mxu0 0.0
    %2226 = vmatpush1.msra.mxu0 0.0
    %2227 = vmatprep.subr.mxu0 0.0
    %2228 = vmatpush1.msra.mxu0 0.0
    %2229 = vmatprep.subr.mxu0 0.0
    %2230 = vmatpush1.msra.mxu0 0.0
    %2231 = vmatprep.subr.mxu0 0.0
    %2232 = vmatpush1.msra.mxu0 0.0
    %2233 = vmatprep.subr.mxu0 0.0
    %2234 = vmatpush1.msra.mxu0 0.0
    %2235 = vmatprep.subr.mxu0 0.0
    %2236 = vmatpush1.msra.mxu0 0.0
    %2237 = vmatprep.subr.mxu0 0.0
    %2238 = vmatpush1.msra.mxu0 0.0
    %2239 = vmatprep.subr.mxu0 0.0
    %2240 = vmatpush1.msra.mxu0 0.0
    %2241 = vmatprep.subr.mxu0 0.0
    %2242 = vmatpush1.msra.mxu0 0.0
    %2243 = vmatprep.subr.mxu0 0.0
    %2244 = vmatpush1.msra.mxu0 0.0
    %2245 = vmatprep.subr.mxu0 0.0
    %2246 = vmatpush1.msra.mxu0 0.0
    %2247 = vmatprep.subr.mxu0 0.0
    %2248 = vmatpush1.msra.mxu0 0.0
    %2249 = vmatprep.subr.mxu0 0.0
    %2250 = vmatpush1.msra.mxu0 0.0
    %2251 = vmatprep.subr.mxu0 0.0
    %2252 = vmatpush1.msra.mxu0 0.0
    %2253 = vmatprep.subr.mxu0 0.0
    %2254 = vmatpush1.msra.mxu0 0.0
    %2255 = vmatprep.subr.mxu0 0.0
    %2256 = vmatpush1.msra.mxu0 0.0
    %2257 = vmatprep.subr.mxu0 0.0
    %2258 = vmatpush1.msra.mxu0 0.0
    %2259 = vmatprep.subr.mxu0 0.0
    %2260 = vmatpush1.msra.mxu0 0.0
    %2261 = vmatprep.subr.mxu0 0.0
    %2262 = vmatpush1.msra.mxu0 0.0
    %2263 = vmatprep.subr.mxu0 0.0
    %2264 = vmatpush1.msra.mxu0 0.0
    %2265 = vmatprep.subr.mxu0 0.0
    %2266 = vmatpush1.msra.mxu0 0.0
    %2267 = vmatprep.subr.mxu0 0.0
    %2268 = vmatpush1.msra.mxu0 0.0
    %2269 = vmatprep.subr.mxu0 0.0
    %2270 = vmatpush1.msra.mxu0 0.0
    %2271 = vmatprep.subr.mxu0 0.0
    %2272 = vmatpush1.msra.mxu0 0.0
    %2273 = vmatprep.subr.mxu0 0.0
    %2274 = vmatpush1.msra.mxu0 0.0
    %2275 = vmatprep.subr.mxu0 0.0
    %2276 = vmatpush1.msra.mxu0 0.0
    %2277 = vmatprep.mubr.f32.mxu0 0.0
    %2278 = vmatmul.mubr.f32.gmra.mrb[0].mxu0 %v2211
    %v2279 = vpop.f32.mrb[0].mxu0
    %v2280 = vadd.f32 0.0, %v2279
    %v2281 = vpop.f32.mrb[0].mxu0
    %2282 = vdwg.mxu0
    %v2283 = vadd.f32 %v2205, %v2280
    %v2284 = vmul.f32 %v2283, 0.5
    %v2285 = vtanh.pop %v2284
    %v2286 = vmul.f32 %v2285, 0.5
    %v2287 = vadd.f32 %v2286, 0.5
    %v2288 = vtanh.pop %v2283
    %v2289 = vmul.f32 %v2287, %v2125
    %2291 = vrot.lane.b32.xlu0 %v2288, 64
    %v2292 = vpop.permute.xlu0 %2291
    %v2294 = vmul.f32 %v2287, %v2292
    %2296 = vrot.lane.b32.xlu0 %v2294, 32
    %v2297 = vpop.permute.xlu0 %2296
    %v2299 = vadd.f32 %v2289, %v2297
    %v2300 = vtanh.pop %v2299
    %2302 = vrot.lane.b32.xlu0 %v2300, 64
    %v2303 = vpop.permute.xlu0 %2302
    %v2305 = vmul.f32 %v2287, %v2303
    %v2306 = vld [vmem:[#allocation2 + $0x80] sm:$0xff]
    %v2307 = vld [vmem:[#allocation2 + $0x88] sm:$0xff]
    %v2308 = vld [vmem:[#allocation2 + $0x90] sm:$0xff]
    %v2309 = vld [vmem:[#allocation2 + $0x98] sm:$0xff]
    %v2310 = vld [vmem:[#allocation2 + $0xa0] sm:$0x1]
    %v2311 = vld [vmem:[#allocation2 + $0xa8] sm:$0xff]
    %v2312 = vld [vmem:[#allocation2 + $0xb0] sm:$0xff]
    %v2313 = vld [vmem:[#allocation2 + $0xb8] sm:$0x1]
    %v2314 = vlaneseq
    %v2315 = vshrl.u32 %v2314, 7
    %v2316 = vsub.s32 0, %v2315
    %v2317 = vrot.slane %v2310, %v2316
    %2319 = vrot.lane.b32.xlu0 %v2305, 32
    %v2320 = vpop.permute.xlu0 %2319
    %v2321 = vsel %vm121, %v2320, 0
    %2323 = vmatprep.subr.mxu0 0.0
    %2324 = vmatpush1.msra.mxu0 %v2306
    %2325 = vmatprep.subr.mxu0 0.0
    %2326 = vmatpush1.msra.mxu0 %v2307
    %2327 = vmatprep.subr.mxu0 0.0
    %2328 = vmatpush1.msra.mxu0 %v2308
    %2329 = vmatprep.subr.mxu0 0.0
    %2330 = vmatpush1.msra.mxu0 %v2309
    %2331 = vmatprep.subr.mxu0 0.0
    %2332 = vmatpush1.msra.mxu0 0.0
    %2333 = vmatprep.subr.mxu0 0.0
    %2334 = vmatpush1.msra.mxu0 0.0
    %2335 = vmatprep.subr.mxu0 0.0
    %2336 = vmatpush1.msra.mxu0 0.0
    %2337 = vmatprep.subr.mxu0 0.0
    %2338 = vmatpush1.msra.mxu0 0.0
    %2339 = vmatprep.subr.mxu0 0.0
    %2340 = vmatpush1.msra.mxu0 0.0
    %2341 = vmatprep.subr.mxu0 0.0
    %2342 = vmatpush1.msra.mxu0 0.0
    %2343 = vmatprep.subr.mxu0 0.0
    %2344 = vmatpush1.msra.mxu0 0.0
    %2345 = vmatprep.subr.mxu0 0.0
    %2346 = vmatpush1.msra.mxu0 0.0
    %2347 = vmatprep.subr.mxu0 0.0
    %2348 = vmatpush1.msra.mxu0 0.0
    %2349 = vmatprep.subr.mxu0 0.0
    %2350 = vmatpush1.msra.mxu0 0.0
    %2351 = vmatprep.subr.mxu0 0.0
    %2352 = vmatpush1.msra.mxu0 0.0
    %2353 = vmatprep.subr.mxu0 0.0
    %2354 = vmatpush1.msra.mxu0 0.0
    %2355 = vmatprep.subr.mxu0 0.0
    %2356 = vmatpush1.msra.mxu0 0.0
    %2357 = vmatprep.subr.mxu0 0.0
    %2358 = vmatpush1.msra.mxu0 0.0
    %2359 = vmatprep.subr.mxu0 0.0
    %2360 = vmatpush1.msra.mxu0 0.0
    %2361 = vmatprep.subr.mxu0 0.0
    %2362 = vmatpush1.msra.mxu0 0.0
    %2363 = vmatprep.subr.mxu0 0.0
    %2364 = vmatpush1.msra.mxu0 0.0
    %2365 = vmatprep.subr.mxu0 0.0
    %2366 = vmatpush1.msra.mxu0 0.0
    %2367 = vmatprep.subr.mxu0 0.0
    %2368 = vmatpush1.msra.mxu0 0.0
    %2369 = vmatprep.subr.mxu0 0.0
    %2370 = vmatpush1.msra.mxu0 0.0
    %2371 = vmatprep.subr.mxu0 0.0
    %2372 = vmatpush1.msra.mxu0 0.0
    %2373 = vmatprep.subr.mxu0 0.0
    %2374 = vmatpush1.msra.mxu0 0.0
    %2375 = vmatprep.subr.mxu0 0.0
    %2376 = vmatpush1.msra.mxu0 0.0
    %2377 = vmatprep.subr.mxu0 0.0
    %2378 = vmatpush1.msra.mxu0 0.0
    %2379 = vmatprep.subr.mxu0 0.0
    %2380 = vmatpush1.msra.mxu0 0.0
    %2381 = vmatprep.subr.mxu0 0.0
    %2382 = vmatpush1.msra.mxu0 0.0
    %2383 = vmatprep.subr.mxu0 0.0
    %2384 = vmatpush1.msra.mxu0 0.0
    %2385 = vmatprep.subr.mxu0 0.0
    %2386 = vmatpush1.msra.mxu0 0.0
    %2387 = vmatprep.mubr.f32.mxu0 0.0
    %2388 = vmatmul.mubr.f32.gmra.mrb[0].mxu0 %v2321
    %v2389 = vpop.f32.mrb[0].mxu0
    %v2390 = vadd.f32 %v2317, %v2389
    %v2391 = vpop.f32.mrb[0].mxu0
    %2392 = vdwg.mxu0
    %v2393 = vmax.f32 %v2390, 0.0
    %v2394 = vlaneseq
    %v2395 = vshrl.u32 %v2394, 7
    %v2396 = vsub.s32 0, %v2395
    %v2397 = vrot.slane %v2313, %v2396
    %v2399 = vsel %vm39, %v2393, 0
    %2401 = vmatprep.subr.mxu0 0.0
    %2402 = vmatpush1.msra.mxu0 %v2311
    %2403 = vmatprep.subr.mxu0 0.0
    %2404 = vmatpush1.msra.mxu0 %v2312
    %2405 = vmatprep.subr.mxu0 0.0
    %2406 = vmatpush1.msra.mxu0 0.0
    %2407 = vmatprep.subr.mxu0 0.0
    %2408 = vmatpush1.msra.mxu0 0.0
    %2409 = vmatprep.subr.mxu0 0.0
    %2410 = vmatpush1.msra.mxu0 0.0
    %2411 = vmatprep.subr.mxu0 0.0
    %2412 = vmatpush1.msra.mxu0 0.0
    %2413 = vmatprep.subr.mxu0 0.0
    %2414 = vmatpush1.msra.mxu0 0.0
    %2415 = vmatprep.subr.mxu0 0.0
    %2416 = vmatpush1.msra.mxu0 0.0
    %2417 = vmatprep.subr.mxu0 0.0
    %2418 = vmatpush1.msra.mxu0 0.0
    %2419 = vmatprep.subr.mxu0 0.0
    %2420 = vmatpush1.msra.mxu0 0.0
    %2421 = vmatprep.subr.mxu0 0.0
    %2422 = vmatpush1.msra.mxu0 0.0
    %2423 = vmatprep.subr.mxu0 0.0
    %2424 = vmatpush1.msra.mxu0 0.0
    %2425 = vmatprep.subr.mxu0 0.0
    %2426 = vmatpush1.msra.mxu0 0.0
    %2427 = vmatprep.subr.mxu0 0.0
    %2428 = vmatpush1.msra.mxu0 0.0
    %2429 = vmatprep.subr.mxu0 0.0
    %2430 = vmatpush1.msra.mxu0 0.0
    %2431 = vmatprep.subr.mxu0 0.0
    %2432 = vmatpush1.msra.mxu0 0.0
    %2433 = vmatprep.subr.mxu0 0.0
    %2434 = vmatpush1.msra.mxu0 0.0
    %2435 = vmatprep.subr.mxu0 0.0
    %2436 = vmatpush1.msra.mxu0 0.0
    %2437 = vmatprep.subr.mxu0 0.0
    %2438 = vmatpush1.msra.mxu0 0.0
    %2439 = vmatprep.subr.mxu0 0.0
    %2440 = vmatpush1.msra.mxu0 0.0
    %2441 = vmatprep.subr.mxu0 0.0
    %2442 = vmatpush1.msra.mxu0 0.0
    %2443 = vmatprep.subr.mxu0 0.0
    %2444 = vmatpush1.msra.mxu0 0.0
    %2445 = vmatprep.subr.mxu0 0.0
    %2446 = vmatpush1.msra.mxu0 0.0
    %2447 = vmatprep.subr.mxu0 0.0
    %2448 = vmatpush1.msra.mxu0 0.0
    %2449 = vmatprep.subr.mxu0 0.0
    %2450 = vmatpush1.msra.mxu0 0.0
    %2451 = vmatprep.subr.mxu0 0.0
    %2452 = vmatpush1.msra.mxu0 0.0
    %2453 = vmatprep.subr.mxu0 0.0
    %2454 = vmatpush1.msra.mxu0 0.0
    %2455 = vmatprep.subr.mxu0 0.0
    %2456 = vmatpush1.msra.mxu0 0.0
    %2457 = vmatprep.subr.mxu0 0.0
    %2458 = vmatpush1.msra.mxu0 0.0
    %2459 = vmatprep.subr.mxu0 0.0
    %2460 = vmatpush1.msra.mxu0 0.0
    %2461 = vmatprep.subr.mxu0 0.0
    %2462 = vmatpush1.msra.mxu0 0.0
    %2463 = vmatprep.subr.mxu0 0.0
    %2464 = vmatpush1.msra.mxu0 0.0
    %2465 = vmatprep.mubr.f32.mxu0 0.0
    %2466 = vmatmul.mubr.f32.gmra.mrb[0].mxu0 %v2399
    %v2467 = vpop.f32.mrb[0].mxu0
    %v2468 = vadd.f32 %v2397, %v2467
    %v2469 = vpop.f32.mrb[0].mxu0
    %2470 = vdwg.mxu0
    %vm2471 = vcmask 25600
    %2472 = vst.msk [vmem:[#allocation5] sm:$0x3] %vm2471, %v2468
    // Predicated region
    $region14: #{lstm_forward.1} parent=1 // pred_check
      _
    $region15: #{lstm_forward.1} parent=1 // pred_check_branch
      %2474 = sbr.rel (0) target = $region17
    $region16: #{lstm_forward.1} parent=1 // pred_region
      %s2476 = ssub.s32 32, 32
      %2477 = vsyncadd [#allocation4], %s2476
      %s2479 = sshll.u32 [#allocation5], 4
      %s2480 = int_to_ptr.vmem [resolvable:$true] %s2479
      %2482 = dma.vmem_to_hbm [thread:$0]  %s2480, 32, %s2, [#allocation4]
    $region17: #{lstm_forward.1} parent=1 // pred_fallthru
      _
    // Predicated region
    $region18: #{lstm_forward.1} parent=1 // pred_check
      _
    $region19: #{lstm_forward.1} parent=1 // pred_check_branch
      %2484 = sbr.rel (0) target = $region21
    $region20: #{lstm_forward.1} parent=1 // pred_region
      %2485 = dma.done [#allocation4], 32
    $region21: #{lstm_forward.1} parent=1 // pred_fallthru
      _
    %2486 = vsyncpa [#allocation3], 1
    %2487 = vsyncpa [#allocation4], 1

</llo_original>
